<compile_context>
chip_gen: v5e
topology: v5e:2x2
jax: 0.10.0
libtpu: 0.0.40
codegen_flags: <defaults>
</compile_context>

<pallas_src>
import functools

import numpy as np
import jax
import jax.numpy as jnp
from jax import lax
from jax.experimental import pallas as pl
from jax.experimental.pallas import tpu as pltpu

COMPUTE_DTYPE = jnp.bfloat16  # MXU input dtype; accumulation stays f32.
LANE = 128


# ------------------------------ fused kernel --------------------------------

def _encoder_fused_kernel(x_ref,
                          w1_ref, b1_ref, w2_ref, b2_ref, w3_ref, b3_ref,
                          wa1_ref, ba1_ref, wb1_ref, bb1_ref,
                          wa2_ref, ba2_ref, wb2_ref, bb2_ref,
                          o_ref, *, hq, e_starts, o_starts):
    """Whole encoder forward for one image in collapsed (rows, W*C) layout."""
    f32 = jnp.float32
    xv = x_ref[...]                         # (H+2, L1) bf16, rows grouped by row%4

    # ---- conv1: 4x4, stride 2, pad 1  (output rows computed as [even ; odd]) ----
    acc1 = jnp.zeros((2 * hq, w1_ref.shape[2]), f32)
    for kh in range(4):
        lhs = jnp.concatenate(
            [xv[e_starts[kh]:e_starts[kh] + hq],      # even output rows 0,2,4,...
             xv[o_starts[kh]:o_starts[kh] + hq]],     # odd  output rows 1,3,5,...
            axis=0)
        acc1 = acc1 + jnp.dot(lhs, w1_ref[kh], preferred_element_type=f32)
    y1 = jnp.maximum(acc1 + b1_ref[...], 0.0).astype(COMPUTE_DTYPE)
    y1_even, y1_odd = y1[:hq], y1[hq:]                # conv1 rows 0,2,.. / 1,3,..

    # ---- conv2: 4x4, stride 2, pad 1  (row padding via zero-row concat) ----
    zrow = jnp.zeros((1, y1.shape[1]), COMPUTE_DTYPE)
    taps2 = (jnp.concatenate([zrow, y1_odd[:-1]], axis=0),   # rows 2i-1
             y1_even,                                        # rows 2i
             y1_odd,                                         # rows 2i+1
             jnp.concatenate([y1_even[1:], zrow], axis=0))   # rows 2i+2
    acc2 = jnp.zeros((hq, w2_ref.shape[2]), f32)
    for kh in range(4):
        acc2 = acc2 + jnp.dot(taps2[kh], w2_ref[kh], preferred_element_type=f32)
    y2 = jnp.maximum(acc2 + b2_ref[...], 0.0).astype(COMPUTE_DTYPE)

    # ---- shared helpers for the stride-1 stages ----
    def conv3x3_same(v, wband_ref, brow_ref):
        z = jnp.zeros((1, v.shape[1]), v.dtype)
        shifts = (jnp.concatenate([z, v[:-1]], axis=0), v,
                  jnp.concatenate([v[1:], z], axis=0))
        acc = jnp.zeros((v.shape[0], wband_ref.shape[2]), f32)
        for kh in range(3):
            acc = acc + jnp.dot(shifts[kh], wband_ref[kh],
                                preferred_element_type=f32)
        return acc + brow_ref[...]

    def res_block(v_bf, v_f32, wa_ref, ba_ref, wb_ref, bb_ref):
        h = jnp.maximum(conv3x3_same(v_bf, wa_ref, ba_ref),
                        0.0).astype(COMPUTE_DTYPE)
        wbv = wb_ref[...]                             # dense (cm, C) 1x1 weight
        cm = wbv.shape[0]
        cols = h.shape[1] // cm
        # 1x1 conv applied per width column: no W^2 block-diagonal weight.
        r = jnp.concatenate(
            [jnp.dot(h[:, j * cm:(j + 1) * cm], wbv, preferred_element_type=f32)
             for j in range(cols)], axis=1)
        return jnp.maximum(r + bb_ref[...] + v_f32, 0.0)

    # ---- conv3 (3x3, pad 1) + ReLU, then two ResBlocks ----
    y3_f32 = jnp.maximum(conv3x3_same(y2, w3_ref, b3_ref), 0.0)
    y3 = y3_f32.astype(COMPUTE_DTYPE)
    y4_f32 = res_block(y3, y3_f32, wa1_ref, ba1_ref, wb1_ref, bb1_ref)
    y4 = y4_f32.astype(COMPUTE_DTYPE)
    y5_f32 = res_block(y4, y4_f32, wa2_ref, ba2_ref, wb2_ref, bb2_ref)
    o_ref[...] = y5_f32.astype(o_ref.dtype)


# --------------------- weight plumbing (built once, wrapper) -----------------

def _banded_weight(w_hwio, win, wo, stride, pad):
    """Fold the kw taps of an HWIO conv weight into a width-banded matmul weight.

    Returns (K, win*Cin, wo*Cout) with
      band[kh][q*Cin+ci, j*Cout+o] = w[kh, kw, ci, o]  where kw = q - (stride*j - pad)
    (zero when kw lies outside [0, K)).  `pad` is the effective left width
    padding NOT already materialized in the input array, so zero band rows
    implement the width padding.
    """
    k1, k2, cin, cout = w_hwio.shape
    q = jnp.arange(win)[:, None]
    j = jnp.arange(wo)[None, :]
    sel = jnp.stack([(q == stride * j - pad + kw) for kw in range(k2)]
                    ).astype(w_hwio.dtype)                   # (K2, win, wo)
    band = jnp.einsum('wqj,hwco->hqcjo', sel, w_hwio)        # (K1, win, Cin, wo, Cout)
    return band.reshape(k1, win * cin, wo * cout)


def _tiled_bias(b, wo):
    return jnp.tile(b.astype(jnp.float32), wo).reshape(1, -1)


# ------------------------------ encoder module ------------------------------

def init_params(key, input_channels=3, n_hid=16):
    """Deterministic parameter init. Weights stored in HWIO layout."""
    ks = jax.random.split(key, 14)
    c2 = 2 * n_hid
    cm = c2 // 4

    def w(k, shape, fan_in):
        return jax.random.normal(k, shape, jnp.float32) / jnp.sqrt(fan_in)

    return {
        "w1": w(ks[0], (4, 4, input_channels, n_hid), 4 * 4 * input_channels),
        "b1": 0.01 * jax.random.normal(ks[1], (n_hid,), jnp.float32),
        "w2": w(ks[2], (4, 4, n_hid, c2), 4 * 4 * n_hid),
        "b2": 0.01 * jax.random.normal(ks[3], (c2,), jnp.float32),
        "w3": w(ks[4], (3, 3, c2, c2), 3 * 3 * c2),
        "b3": 0.01 * jax.random.normal(ks[5], (c2,), jnp.float32),
        "rb1_wa": w(ks[6], (3, 3, c2, cm), 3 * 3 * c2),
        "rb1_ba": 0.01 * jax.random.normal(ks[7], (cm,), jnp.float32),
        "rb1_wb": w(ks[8], (1, 1, cm, c2), cm),
        "rb1_bb": 0.01 * jax.random.normal(ks[9], (c2,), jnp.float32),
        "rb2_wa": w(ks[10], (3, 3, c2, cm), 3 * 3 * c2),
        "rb2_ba": 0.01 * jax.random.normal(ks[11], (cm,), jnp.float32),
        "rb2_wb": w(ks[12], (1, 1, cm, c2), cm),
        "rb2_bb": 0.01 * jax.random.normal(ks[13], (c2,), jnp.float32),
    }


@jax.jit
def deepmind_encoder_forward(x_nchw, params):
    """Forward pass matching the PyTorch DeepMindEncoder.

    Input:  x (N, C_in, H, W)   [NCHW, PyTorch convention]
    Output:    (N, 2*n_hid, H/4, W/4)  float32
    """
    n, cin, h, w = x_nchw.shape
    assert h % 4 == 0 and w % 4 == 0
    n_hid = params["w1"].shape[-1]
    c2 = params["w2"].shape[-1]
    hp, wp = h + 2, w + 2
    w2_ = w // 2
    hq, wq = h // 4, w // 4

    # ---- input prep: bf16 first, then layout-only ops ----
    x = jnp.transpose(x_nchw.astype(COMPUTE_DTYPE), (0, 2, 3, 1))  # NHWC bf16
    x = jnp.pad(x, ((0, 0), (1, 1), (1, 1), (0, 0)))               # spatial pad 1
    x = x.reshape(n, hp, wp * cin)                                 # collapse W*C
    l_raw = wp * cin
    l1 = ((l_raw + LANE - 1) // LANE) * LANE
    if l1 != l_raw:
        x = jnp.pad(x, ((0, 0), (0, 0), (0, l1 - l_raw)))          # lane-pad to 128*
    # Group padded rows by (row % 4) so every stride-2 row tap in the kernel
    # (conv1, and conv2 via conv1's even/odd halves) is a contiguous slice.
    perm = np.concatenate([np.arange(g, hp, 4) for g in range(4)])
    x = x[:, perm, :]
    sizes = [len(range(g, hp, 4)) for g in range(4)]
    off = np.cumsum([0] + sizes[:-1])
    e_starts = tuple(int(off[k]) for k in range(4))
    o_starts = (int(off[2]), int(off[3]), int(off[0]) + 1, int(off[1]) + 1)

    # ---- fold width taps / width padding into banded weights (built once) ----
    wband1 = _banded_weight(params["w1"], wp, w2_, 2, 0)           # input pre-padded
    wband1 = jnp.pad(wband1, ((0, 0), (0, l1 - l_raw), (0, 0))).astype(COMPUTE_DTYPE)
    wband2 = _banded_weight(params["w2"], w2_, wq, 2, 1).astype(COMPUTE_DTYPE)
    wband3 = _banded_weight(params["w3"], wq, wq, 1, 1).astype(COMPUTE_DTYPE)
    wbanda1 = _banded_weight(params["rb1_wa"], wq, wq, 1, 1).astype(COMPUTE_DTYPE)
    wbanda2 = _banded_weight(params["rb2_wa"], wq, wq, 1, 1).astype(COMPUTE_DTYPE)
    wb1 = params["rb1_wb"][0, 0].astype(COMPUTE_DTYPE)             # dense (cm, c2)
    wb2 = params["rb2_wb"][0, 0].astype(COMPUTE_DTYPE)
    b1r = _tiled_bias(params["b1"], w2_)
    b2r = _tiled_bias(params["b2"], wq)
    b3r = _tiled_bias(params["b3"], wq)
    ba1r = _tiled_bias(params["rb1_ba"], wq)
    bb1r = _tiled_bias(params["rb1_bb"], wq)
    ba2r = _tiled_bias(params["rb2_ba"], wq)
    bb2r = _tiled_bias(params["rb2_bb"], wq)

    operands = (x, wband1, b1r, wband2, b2r, wband3, b3r,
                wbanda1, ba1r, wb1, bb1r, wbanda2, ba2r, wb2, bb2r)

    def const_spec(a):
        nd = a.ndim
        return pl.BlockSpec(a.shape, lambda i, _n=nd: (0,) * _n)

    in_specs = [pl.BlockSpec((None, hp, l1), lambda i: (i, 0, 0))]
    in_specs += [const_spec(a) for a in operands[1:]]

    kernel = functools.partial(_encoder_fused_kernel, hq=hq,
                               e_starts=e_starts, o_starts=o_starts)

    out = pl.pallas_call(
        kernel,
        out_shape=jax.ShapeDtypeStruct((n, hq, wq * c2), jnp.float32),
        grid=(n,),
        in_specs=in_specs,
        out_specs=pl.BlockSpec((None, hq, wq * c2), lambda i: (i, 0, 0)),
        compiler_params=pltpu.CompilerParams(dimension_semantics=("parallel",)),
    )(*operands)

    out = out.reshape(n, hq, wq, c2)
    return jnp.transpose(out, (0, 3, 1, 2))  # back to NCHW, f32


# ------------------------------- pure-JAX ref --------------------------------

def _conv_ref(x, w_hwio, b, stride, pad):
    y = lax.conv_general_dilated(
        x, w_hwio, window_strides=(stride, stride),
        padding=((pad, pad), (pad, pad)),
        dimension_numbers=("NHWC", "HWIO", "NHWC"))
    return y + b


def reference_forward(x_nchw, p):
    x = jnp.transpose(x_nchw, (0, 2, 3, 1)).astype(jnp.float32)
    x = jax.nn.relu(_conv_ref(x, p["w1"], p["b1"], 2, 1))
    x = jax.nn.relu(_conv_ref(x, p["w2"], p["b2"], 2, 1))
    x = jax.nn.relu(_conv_ref(x, p["w3"], p["b3"], 1, 1))
    for tag in ("rb1", "rb2"):
        h = jax.nn.relu(_conv_ref(x, p[f"{tag}_wa"], p[f"{tag}_ba"], 1, 1))
        h = _conv_ref(h, p[f"{tag}_wb"], p[f"{tag}_bb"], 1, 0)
        x = jax.nn.relu(h + x)
    return jnp.transpose(x, (0, 3, 1, 2))


# ---------------------------------- main -------------------------------------

if __name__ == "__main__":
    key = jax.random.PRNGKey(0)
    k_x, k_p = jax.random.split(key)

    batch, in_ch, hw, n_hid = 2, 3, 16, 16
    x = jax.random.normal(k_x, (batch, in_ch, hw, hw), jnp.float32)  # NCHW
    params = init_params(k_p, input_channels=in_ch, n_hid=n_hid)

    out = deepmind_encoder_forward(x, params)
    out = jax.block_until_ready(out)

    expected_shape = (batch, 2 * n_hid, hw // 4, hw // 4)
    assert out.shape == expected_shape, (out.shape, expected_shape)

    ref = jax.block_until_ready(reference_forward(x, params))
    # bf16 MXU inputs -> loosened tolerance vs the f32 lax.conv reference.
    assert jnp.allclose(out, ref, rtol=5e-2, atol=6e-2), float(
        jnp.max(jnp.abs(out - ref)))

    print("KERNEL_OK")
</pallas_src>

<mosaic_0001>
module attributes {stable_mosaic.version = 11 : i64} {
  func.func @_encoder_fused_kernel(%arg0: i32, %arg1: memref<1x18x128xbf16, #tpu.memory_space<vmem>>, %arg2: memref<4x128x128xbf16, #tpu.memory_space<vmem>>, %arg3: memref<1x128xf32, #tpu.memory_space<vmem>>, %arg4: memref<4x128x128xbf16, #tpu.memory_space<vmem>>, %arg5: memref<1x128xf32, #tpu.memory_space<vmem>>, %arg6: memref<3x128x128xbf16, #tpu.memory_space<vmem>>, %arg7: memref<1x128xf32, #tpu.memory_space<vmem>>, %arg8: memref<3x128x32xbf16, #tpu.memory_space<vmem>>, %arg9: memref<1x32xf32, #tpu.memory_space<vmem>>, %arg10: memref<8x32xbf16, #tpu.memory_space<vmem>>, %arg11: memref<1x128xf32, #tpu.memory_space<vmem>>, %arg12: memref<3x128x32xbf16, #tpu.memory_space<vmem>>, %arg13: memref<1x32xf32, #tpu.memory_space<vmem>>, %arg14: memref<8x32xbf16, #tpu.memory_space<vmem>>, %arg15: memref<1x128xf32, #tpu.memory_space<vmem>>, %arg16: memref<1x4x128xf32, #tpu.memory_space<vmem>>) attributes {dimension_semantics = [#tpu.dimension_semantics<parallel>], iteration_bounds = array<i64: 2>, scalar_prefetch = 0 : i64, scratch_operands = 0 : i64, tpu.core_type = #tpu.core_type<tc>, window_params = [{transform_indices = @transform_0, window_bounds = array<i64: 1, 18, 128>}, {pipeline_mode = #tpu.pipeline_mode<synchronous>, transform_indices = @transform_1, window_bounds = array<i64: 4, 128, 128>}, {pipeline_mode = #tpu.pipeline_mode<synchronous>, transform_indices = @transform_2, window_bounds = array<i64: 1, 128>}, {pipeline_mode = #tpu.pipeline_mode<synchronous>, transform_indices = @transform_3, window_bounds = array<i64: 4, 128, 128>}, {pipeline_mode = #tpu.pipeline_mode<synchronous>, transform_indices = @transform_4, window_bounds = array<i64: 1, 128>}, {pipeline_mode = #tpu.pipeline_mode<synchronous>, transform_indices = @transform_5, window_bounds = array<i64: 3, 128, 128>}, {pipeline_mode = #tpu.pipeline_mode<synchronous>, transform_indices = @transform_6, window_bounds = array<i64: 1, 128>}, {pipeline_mode = #tpu.pipeline_mode<synchronous>, transform_indices = @transform_7, window_bounds = array<i64: 3, 128, 32>}, {pipeline_mode = #tpu.pipeline_mode<synchronous>, transform_indices = @transform_8, window_bounds = array<i64: 1, 32>}, {pipeline_mode = #tpu.pipeline_mode<synchronous>, transform_indices = @transform_9, window_bounds = array<i64: 8, 32>}, {pipeline_mode = #tpu.pipeline_mode<synchronous>, transform_indices = @transform_10, window_bounds = array<i64: 1, 128>}, {pipeline_mode = #tpu.pipeline_mode<synchronous>, transform_indices = @transform_11, window_bounds = array<i64: 3, 128, 32>}, {pipeline_mode = #tpu.pipeline_mode<synchronous>, transform_indices = @transform_12, window_bounds = array<i64: 1, 32>}, {pipeline_mode = #tpu.pipeline_mode<synchronous>, transform_indices = @transform_13, window_bounds = array<i64: 8, 32>}, {pipeline_mode = #tpu.pipeline_mode<synchronous>, transform_indices = @transform_14, window_bounds = array<i64: 1, 128>}, {transform_indices = @transform_15, window_bounds = array<i64: 1, 4, 128>}]} {
    %c0 = arith.constant 0 : index
    %c0_0 = arith.constant 0 : index
    %c0_1 = arith.constant 0 : index
    %0 = vector.load %arg1[%c0, %c0_0, %c0_1] : memref<1x18x128xbf16, #tpu.memory_space<vmem>>, vector<1x18x128xbf16>
    %1 = vector.shape_cast %0 : vector<1x18x128xbf16> to vector<18x128xbf16>
    %cst = arith.constant 0.000000e+00 : f32
    %2 = vector.broadcast %cst : f32 to vector<8x128xf32>
    %3 = vector.extract_strided_slice %1 {offsets = [0, 0], sizes = [4, 128], strides = [1, 1]} : vector<18x128xbf16> to vector<4x128xbf16>
    %4 = vector.extract_strided_slice %1 {offsets = [10, 0], sizes = [4, 128], strides = [1, 1]} : vector<18x128xbf16> to vector<4x128xbf16>
    %5 = tpu.concatenate %3, %4 in 0 : vector<4x128xbf16>, vector<4x128xbf16> -> vector<8x128xbf16>
    %c0_2 = arith.constant 0 : index
    %c0_3 = arith.constant 0 : index
    %c0_4 = arith.constant 0 : index
    %6 = vector.load %arg2[%c0_2, %c0_3, %c0_4] : memref<4x128x128xbf16, #tpu.memory_space<vmem>>, vector<1x128x128xbf16>
    %7 = vector.shape_cast %6 : vector<1x128x128xbf16> to vector<128x128xbf16>
    %cst_5 = arith.constant dense<0.000000e+00> : vector<8x128xf32>
    %8 = tpu.matmul %5, %7, %cst_5 {dimension_numbers = #tpu.dot_dimension_numbers<[1], [0], [0], [1], [0, 0, 1, 1], [], []>} : vector<8x128xbf16>, vector<128x128xbf16>, vector<8x128xf32> -> vector<8x128xf32>
    %9 = arith.addf %2, %8 : vector<8x128xf32>
    %10 = vector.extract_strided_slice %1 {offsets = [5, 0], sizes = [4, 128], strides = [1, 1]} : vector<18x128xbf16> to vector<4x128xbf16>
    %11 = vector.extract_strided_slice %1 {offsets = [14, 0], sizes = [4, 128], strides = [1, 1]} : vector<18x128xbf16> to vector<4x128xbf16>
    %12 = tpu.concatenate %10, %11 in 0 : vector<4x128xbf16>, vector<4x128xbf16> -> vector<8x128xbf16>
    %c1 = arith.constant 1 : index
    %c0_6 = arith.constant 0 : index
    %c0_7 = arith.constant 0 : index
    %13 = vector.load %arg2[%c1, %c0_6, %c0_7] : memref<4x128x128xbf16, #tpu.memory_space<vmem>>, vector<1x128x128xbf16>
    %14 = vector.shape_cast %13 : vector<1x128x128xbf16> to vector<128x128xbf16>
    %cst_8 = arith.constant dense<0.000000e+00> : vector<8x128xf32>
    %15 = tpu.matmul %12, %14, %cst_8 {dimension_numbers = #tpu.dot_dimension_numbers<[1], [0], [0], [1], [0, 0, 1, 1], [], []>} : vector<8x128xbf16>, vector<128x128xbf16>, vector<8x128xf32> -> vector<8x128xf32>
    %16 = arith.addf %9, %15 : vector<8x128xf32>
    %17 = vector.extract_strided_slice %1 {offsets = [10, 0], sizes = [4, 128], strides = [1, 1]} : vector<18x128xbf16> to vector<4x128xbf16>
    %18 = vector.extract_strided_slice %1 {offsets = [1, 0], sizes = [4, 128], strides = [1, 1]} : vector<18x128xbf16> to vector<4x128xbf16>
    %19 = tpu.concatenate %17, %18 in 0 : vector<4x128xbf16>, vector<4x128xbf16> -> vector<8x128xbf16>
    %c2 = arith.constant 2 : index
    %c0_9 = arith.constant 0 : index
    %c0_10 = arith.constant 0 : index
    %20 = vector.load %arg2[%c2, %c0_9, %c0_10] : memref<4x128x128xbf16, #tpu.memory_space<vmem>>, vector<1x128x128xbf16>
    %21 = vector.shape_cast %20 : vector<1x128x128xbf16> to vector<128x128xbf16>
    %cst_11 = arith.constant dense<0.000000e+00> : vector<8x128xf32>
    %22 = tpu.matmul %19, %21, %cst_11 {dimension_numbers = #tpu.dot_dimension_numbers<[1], [0], [0], [1], [0, 0, 1, 1], [], []>} : vector<8x128xbf16>, vector<128x128xbf16>, vector<8x128xf32> -> vector<8x128xf32>
    %23 = arith.addf %16, %22 : vector<8x128xf32>
    %24 = vector.extract_strided_slice %1 {offsets = [14, 0], sizes = [4, 128], strides = [1, 1]} : vector<18x128xbf16> to vector<4x128xbf16>
    %25 = vector.extract_strided_slice %1 {offsets = [6, 0], sizes = [4, 128], strides = [1, 1]} : vector<18x128xbf16> to vector<4x128xbf16>
    %26 = tpu.concatenate %24, %25 in 0 : vector<4x128xbf16>, vector<4x128xbf16> -> vector<8x128xbf16>
    %c3 = arith.constant 3 : index
    %c0_12 = arith.constant 0 : index
    %c0_13 = arith.constant 0 : index
    %27 = vector.load %arg2[%c3, %c0_12, %c0_13] : memref<4x128x128xbf16, #tpu.memory_space<vmem>>, vector<1x128x128xbf16>
    %28 = vector.shape_cast %27 : vector<1x128x128xbf16> to vector<128x128xbf16>
    %cst_14 = arith.constant dense<0.000000e+00> : vector<8x128xf32>
    %29 = tpu.matmul %26, %28, %cst_14 {dimension_numbers = #tpu.dot_dimension_numbers<[1], [0], [0], [1], [0, 0, 1, 1], [], []>} : vector<8x128xbf16>, vector<128x128xbf16>, vector<8x128xf32> -> vector<8x128xf32>
    %30 = arith.addf %23, %29 : vector<8x128xf32>
    %c0_15 = arith.constant 0 : index
    %c0_16 = arith.constant 0 : index
    %31 = vector.load %arg3[%c0_15, %c0_16] : memref<1x128xf32, #tpu.memory_space<vmem>>, vector<1x128xf32>
    %32 = vector.broadcast %31 : vector<1x128xf32> to vector<8x128xf32>
    %33 = arith.addf %30, %32 : vector<8x128xf32>
    %cst_17 = arith.constant 0.000000e+00 : f32
    %34 = vector.broadcast %cst_17 : f32 to vector<8x128xf32>
    %35 = arith.maximumf %33, %34 : vector<8x128xf32>
    %36 = arith.truncf %35 : vector<8x128xf32> to vector<8x128xbf16>
    %37 = vector.extract_strided_slice %36 {offsets = [0, 0], sizes = [4, 128], strides = [1, 1]} : vector<8x128xbf16> to vector<4x128xbf16>
    %38 = vector.extract_strided_slice %36 {offsets = [4, 0], sizes = [4, 128], strides = [1, 1]} : vector<8x128xbf16> to vector<4x128xbf16>
    %cst_18 = arith.constant 0.000000e+00 : bf16
    %39 = vector.broadcast %cst_18 : bf16 to vector<1x128xbf16>
    %40 = vector.extract_strided_slice %38 {offsets = [0, 0], sizes = [3, 128], strides = [1, 1]} : vector<4x128xbf16> to vector<3x128xbf16>
    %41 = tpu.concatenate %39, %40 in 0 : vector<1x128xbf16>, vector<3x128xbf16> -> vector<4x128xbf16>
    %42 = vector.extract_strided_slice %37 {offsets = [1, 0], sizes = [3, 128], strides = [1, 1]} : vector<4x128xbf16> to vector<3x128xbf16>
    %43 = tpu.concatenate %42, %39 in 0 : vector<3x128xbf16>, vector<1x128xbf16> -> vector<4x128xbf16>
    %cst_19 = arith.constant 0.000000e+00 : f32
    %44 = vector.broadcast %cst_19 : f32 to vector<4x128xf32>
    %c0_20 = arith.constant 0 : index
    %c0_21 = arith.constant 0 : index
    %c0_22 = arith.constant 0 : index
    %45 = vector.load %arg4[%c0_20, %c0_21, %c0_22] : memref<4x128x128xbf16, #tpu.memory_space<vmem>>, vector<1x128x128xbf16>
    %46 = vector.shape_cast %45 : vector<1x128x128xbf16> to vector<128x128xbf16>
    %cst_23 = arith.constant dense<0.000000e+00> : vector<4x128xf32>
    %47 = tpu.matmul %41, %46, %cst_23 {dimension_numbers = #tpu.dot_dimension_numbers<[1], [0], [0], [1], [0, 0, 1, 1], [], []>} : vector<4x128xbf16>, vector<128x128xbf16>, vector<4x128xf32> -> vector<4x128xf32>
    %48 = arith.addf %44, %47 : vector<4x128xf32>
    %c1_24 = arith.constant 1 : index
    %c0_25 = arith.constant 0 : index
    %c0_26 = arith.constant 0 : index
    %49 = vector.load %arg4[%c1_24, %c0_25, %c0_26] : memref<4x128x128xbf16, #tpu.memory_space<vmem>>, vector<1x128x128xbf16>
    %50 = vector.shape_cast %49 : vector<1x128x128xbf16> to vector<128x128xbf16>
    %cst_27 = arith.constant dense<0.000000e+00> : vector<4x128xf32>
    %51 = tpu.matmul %37, %50, %cst_27 {dimension_numbers = #tpu.dot_dimension_numbers<[1], [0], [0], [1], [0, 0, 1, 1], [], []>} : vector<4x128xbf16>, vector<128x128xbf16>, vector<4x128xf32> -> vector<4x128xf32>
    %52 = arith.addf %48, %51 : vector<4x128xf32>
    %c2_28 = arith.constant 2 : index
    %c0_29 = arith.constant 0 : index
    %c0_30 = arith.constant 0 : index
    %53 = vector.load %arg4[%c2_28, %c0_29, %c0_30] : memref<4x128x128xbf16, #tpu.memory_space<vmem>>, vector<1x128x128xbf16>
    %54 = vector.shape_cast %53 : vector<1x128x128xbf16> to vector<128x128xbf16>
    %cst_31 = arith.constant dense<0.000000e+00> : vector<4x128xf32>
    %55 = tpu.matmul %38, %54, %cst_31 {dimension_numbers = #tpu.dot_dimension_numbers<[1], [0], [0], [1], [0, 0, 1, 1], [], []>} : vector<4x128xbf16>, vector<128x128xbf16>, vector<4x128xf32> -> vector<4x128xf32>
    %56 = arith.addf %52, %55 : vector<4x128xf32>
    %c3_32 = arith.constant 3 : index
    %c0_33 = arith.constant 0 : index
    %c0_34 = arith.constant 0 : index
    %57 = vector.load %arg4[%c3_32, %c0_33, %c0_34] : memref<4x128x128xbf16, #tpu.memory_space<vmem>>, vector<1x128x128xbf16>
    %58 = vector.shape_cast %57 : vector<1x128x128xbf16> to vector<128x128xbf16>
    %cst_35 = arith.constant dense<0.000000e+00> : vector<4x128xf32>
    %59 = tpu.matmul %43, %58, %cst_35 {dimension_numbers = #tpu.dot_dimension_numbers<[1], [0], [0], [1], [0, 0, 1, 1], [], []>} : vector<4x128xbf16>, vector<128x128xbf16>, vector<4x128xf32> -> vector<4x128xf32>
    %60 = arith.addf %56, %59 : vector<4x128xf32>
    %c0_36 = arith.constant 0 : index
    %c0_37 = arith.constant 0 : index
    %61 = vector.load %arg5[%c0_36, %c0_37] : memref<1x128xf32, #tpu.memory_space<vmem>>, vector<1x128xf32>
    %62 = vector.broadcast %61 : vector<1x128xf32> to vector<4x128xf32>
    %63 = arith.addf %60, %62 : vector<4x128xf32>
    %cst_38 = arith.constant 0.000000e+00 : f32
    %64 = vector.broadcast %cst_38 : f32 to vector<4x128xf32>
    %65 = arith.maximumf %63, %64 : vector<4x128xf32>
    %66 = arith.truncf %65 : vector<4x128xf32> to vector<4x128xbf16>
    %cst_39 = arith.constant 0.000000e+00 : bf16
    %67 = vector.broadcast %cst_39 : bf16 to vector<1x128xbf16>
    %68 = vector.extract_strided_slice %66 {offsets = [0, 0], sizes = [3, 128], strides = [1, 1]} : vector<4x128xbf16> to vector<3x128xbf16>
    %69 = tpu.concatenate %67, %68 in 0 : vector<1x128xbf16>, vector<3x128xbf16> -> vector<4x128xbf16>
    %70 = vector.extract_strided_slice %66 {offsets = [1, 0], sizes = [3, 128], strides = [1, 1]} : vector<4x128xbf16> to vector<3x128xbf16>
    %71 = tpu.concatenate %70, %67 in 0 : vector<3x128xbf16>, vector<1x128xbf16> -> vector<4x128xbf16>
    %cst_40 = arith.constant 0.000000e+00 : f32
    %72 = vector.broadcast %cst_40 : f32 to vector<4x128xf32>
    %c0_41 = arith.constant 0 : index
    %c0_42 = arith.constant 0 : index
    %c0_43 = arith.constant 0 : index
    %73 = vector.load %arg6[%c0_41, %c0_42, %c0_43] : memref<3x128x128xbf16, #tpu.memory_space<vmem>>, vector<1x128x128xbf16>
    %74 = vector.shape_cast %73 : vector<1x128x128xbf16> to vector<128x128xbf16>
    %cst_44 = arith.constant dense<0.000000e+00> : vector<4x128xf32>
    %75 = tpu.matmul %69, %74, %cst_44 {dimension_numbers = #tpu.dot_dimension_numbers<[1], [0], [0], [1], [0, 0, 1, 1], [], []>} : vector<4x128xbf16>, vector<128x128xbf16>, vector<4x128xf32> -> vector<4x128xf32>
    %76 = arith.addf %72, %75 : vector<4x128xf32>
    %c1_45 = arith.constant 1 : index
    %c0_46 = arith.constant 0 : index
    %c0_47 = arith.constant 0 : index
    %77 = vector.load %arg6[%c1_45, %c0_46, %c0_47] : memref<3x128x128xbf16, #tpu.memory_space<vmem>>, vector<1x128x128xbf16>
    %78 = vector.shape_cast %77 : vector<1x128x128xbf16> to vector<128x128xbf16>
    %cst_48 = arith.constant dense<0.000000e+00> : vector<4x128xf32>
    %79 = tpu.matmul %66, %78, %cst_48 {dimension_numbers = #tpu.dot_dimension_numbers<[1], [0], [0], [1], [0, 0, 1, 1], [], []>} : vector<4x128xbf16>, vector<128x128xbf16>, vector<4x128xf32> -> vector<4x128xf32>
    %80 = arith.addf %76, %79 : vector<4x128xf32>
    %c2_49 = arith.constant 2 : index
    %c0_50 = arith.constant 0 : index
    %c0_51 = arith.constant 0 : index
    %81 = vector.load %arg6[%c2_49, %c0_50, %c0_51] : memref<3x128x128xbf16, #tpu.memory_space<vmem>>, vector<1x128x128xbf16>
    %82 = vector.shape_cast %81 : vector<1x128x128xbf16> to vector<128x128xbf16>
    %cst_52 = arith.constant dense<0.000000e+00> : vector<4x128xf32>
    %83 = tpu.matmul %71, %82, %cst_52 {dimension_numbers = #tpu.dot_dimension_numbers<[1], [0], [0], [1], [0, 0, 1, 1], [], []>} : vector<4x128xbf16>, vector<128x128xbf16>, vector<4x128xf32> -> vector<4x128xf32>
    %84 = arith.addf %80, %83 : vector<4x128xf32>
    %c0_53 = arith.constant 0 : index
    %c0_54 = arith.constant 0 : index
    %85 = vector.load %arg7[%c0_53, %c0_54] : memref<1x128xf32, #tpu.memory_space<vmem>>, vector<1x128xf32>
    %86 = vector.broadcast %85 : vector<1x128xf32> to vector<4x128xf32>
    %87 = arith.addf %84, %86 : vector<4x128xf32>
    %cst_55 = arith.constant 0.000000e+00 : f32
    %88 = vector.broadcast %cst_55 : f32 to vector<4x128xf32>
    %89 = arith.maximumf %87, %88 : vector<4x128xf32>
    %90 = arith.truncf %89 : vector<4x128xf32> to vector<4x128xbf16>
    %cst_56 = arith.constant 0.000000e+00 : bf16
    %91 = vector.broadcast %cst_56 : bf16 to vector<1x128xbf16>
    %92 = vector.extract_strided_slice %90 {offsets = [0, 0], sizes = [3, 128], strides = [1, 1]} : vector<4x128xbf16> to vector<3x128xbf16>
    %93 = tpu.concatenate %91, %92 in 0 : vector<1x128xbf16>, vector<3x128xbf16> -> vector<4x128xbf16>
    %94 = vector.extract_strided_slice %90 {offsets = [1, 0], sizes = [3, 128], strides = [1, 1]} : vector<4x128xbf16> to vector<3x128xbf16>
    %95 = tpu.concatenate %94, %91 in 0 : vector<3x128xbf16>, vector<1x128xbf16> -> vector<4x128xbf16>
    %cst_57 = arith.constant 0.000000e+00 : f32
    %96 = vector.broadcast %cst_57 : f32 to vector<4x32xf32>
    %c0_58 = arith.constant 0 : index
    %c0_59 = arith.constant 0 : index
    %c0_60 = arith.constant 0 : index
    %97 = vector.load %arg8[%c0_58, %c0_59, %c0_60] : memref<3x128x32xbf16, #tpu.memory_space<vmem>>, vector<1x128x32xbf16>
    %98 = vector.shape_cast %97 : vector<1x128x32xbf16> to vector<128x32xbf16>
    %cst_61 = arith.constant dense<0.000000e+00> : vector<4x32xf32>
    %99 = tpu.matmul %93, %98, %cst_61 {dimension_numbers = #tpu.dot_dimension_numbers<[1], [0], [0], [1], [0, 0, 1, 1], [], []>} : vector<4x128xbf16>, vector<128x32xbf16>, vector<4x32xf32> -> vector<4x32xf32>
    %100 = arith.addf %96, %99 : vector<4x32xf32>
    %c1_62 = arith.constant 1 : index
    %c0_63 = arith.constant 0 : index
    %c0_64 = arith.constant 0 : index
    %101 = vector.load %arg8[%c1_62, %c0_63, %c0_64] : memref<3x128x32xbf16, #tpu.memory_space<vmem>>, vector<1x128x32xbf16>
    %102 = vector.shape_cast %101 : vector<1x128x32xbf16> to vector<128x32xbf16>
    %cst_65 = arith.constant dense<0.000000e+00> : vector<4x32xf32>
    %103 = tpu.matmul %90, %102, %cst_65 {dimension_numbers = #tpu.dot_dimension_numbers<[1], [0], [0], [1], [0, 0, 1, 1], [], []>} : vector<4x128xbf16>, vector<128x32xbf16>, vector<4x32xf32> -> vector<4x32xf32>
    %104 = arith.addf %100, %103 : vector<4x32xf32>
    %c2_66 = arith.constant 2 : index
    %c0_67 = arith.constant 0 : index
    %c0_68 = arith.constant 0 : index
    %105 = vector.load %arg8[%c2_66, %c0_67, %c0_68] : memref<3x128x32xbf16, #tpu.memory_space<vmem>>, vector<1x128x32xbf16>
    %106 = vector.shape_cast %105 : vector<1x128x32xbf16> to vector<128x32xbf16>
    %cst_69 = arith.constant dense<0.000000e+00> : vector<4x32xf32>
    %107 = tpu.matmul %95, %106, %cst_69 {dimension_numbers = #tpu.dot_dimension_numbers<[1], [0], [0], [1], [0, 0, 1, 1], [], []>} : vector<4x128xbf16>, vector<128x32xbf16>, vector<4x32xf32> -> vector<4x32xf32>
    %108 = arith.addf %104, %107 : vector<4x32xf32>
    %c0_70 = arith.constant 0 : index
    %c0_71 = arith.constant 0 : index
    %109 = vector.load %arg9[%c0_70, %c0_71] : memref<1x32xf32, #tpu.memory_space<vmem>>, vector<1x32xf32>
    %110 = vector.broadcast %109 : vector<1x32xf32> to vector<4x32xf32>
    %111 = arith.addf %108, %110 : vector<4x32xf32>
    %cst_72 = arith.constant 0.000000e+00 : f32
    %112 = vector.broadcast %cst_72 : f32 to vector<4x32xf32>
    %113 = arith.maximumf %111, %112 : vector<4x32xf32>
    %114 = arith.truncf %113 : vector<4x32xf32> to vector<4x32xbf16>
    %c0_73 = arith.constant 0 : index
    %c0_74 = arith.constant 0 : index
    %115 = vector.load %arg10[%c0_73, %c0_74] : memref<8x32xbf16, #tpu.memory_space<vmem>>, vector<8x32xbf16>
    %116 = vector.extract_strided_slice %114 {offsets = [0, 0], sizes = [4, 8], strides = [1, 1]} : vector<4x32xbf16> to vector<4x8xbf16>
    %cst_75 = arith.constant dense<0.000000e+00> : vector<4x32xf32>
    %117 = tpu.matmul %116, %115, %cst_75 {dimension_numbers = #tpu.dot_dimension_numbers<[1], [0], [0], [1], [0, 0, 1, 1], [], []>} : vector<4x8xbf16>, vector<8x32xbf16>, vector<4x32xf32> -> vector<4x32xf32>
    %118 = vector.extract_strided_slice %114 {offsets = [0, 8], sizes = [4, 8], strides = [1, 1]} : vector<4x32xbf16> to vector<4x8xbf16>
    %cst_76 = arith.constant dense<0.000000e+00> : vector<4x32xf32>
    %119 = tpu.matmul %118, %115, %cst_76 {dimension_numbers = #tpu.dot_dimension_numbers<[1], [0], [0], [1], [0, 0, 1, 1], [], []>} : vector<4x8xbf16>, vector<8x32xbf16>, vector<4x32xf32> -> vector<4x32xf32>
    %120 = vector.extract_strided_slice %114 {offsets = [0, 16], sizes = [4, 8], strides = [1, 1]} : vector<4x32xbf16> to vector<4x8xbf16>
    %cst_77 = arith.constant dense<0.000000e+00> : vector<4x32xf32>
    %121 = tpu.matmul %120, %115, %cst_77 {dimension_numbers = #tpu.dot_dimension_numbers<[1], [0], [0], [1], [0, 0, 1, 1], [], []>} : vector<4x8xbf16>, vector<8x32xbf16>, vector<4x32xf32> -> vector<4x32xf32>
    %122 = vector.extract_strided_slice %114 {offsets = [0, 24], sizes = [4, 8], strides = [1, 1]} : vector<4x32xbf16> to vector<4x8xbf16>
    %cst_78 = arith.constant dense<0.000000e+00> : vector<4x32xf32>
    %123 = tpu.matmul %122, %115, %cst_78 {dimension_numbers = #tpu.dot_dimension_numbers<[1], [0], [0], [1], [0, 0, 1, 1], [], []>} : vector<4x8xbf16>, vector<8x32xbf16>, vector<4x32xf32> -> vector<4x32xf32>
    %124 = tpu.concatenate %117, %119, %121, %123 in 1 : vector<4x32xf32>, vector<4x32xf32>, vector<4x32xf32>, vector<4x32xf32> -> vector<4x128xf32>
    %c0_79 = arith.constant 0 : index
    %c0_80 = arith.constant 0 : index
    %125 = vector.load %arg11[%c0_79, %c0_80] : memref<1x128xf32, #tpu.memory_space<vmem>>, vector<1x128xf32>
    %126 = vector.broadcast %125 : vector<1x128xf32> to vector<4x128xf32>
    %127 = arith.addf %124, %126 : vector<4x128xf32>
    %128 = arith.addf %127, %89 : vector<4x128xf32>
    %cst_81 = arith.constant 0.000000e+00 : f32
    %129 = vector.broadcast %cst_81 : f32 to vector<4x128xf32>
    %130 = arith.maximumf %128, %129 : vector<4x128xf32>
    %131 = arith.truncf %130 : vector<4x128xf32> to vector<4x128xbf16>
    %cst_82 = arith.constant 0.000000e+00 : bf16
    %132 = vector.broadcast %cst_82 : bf16 to vector<1x128xbf16>
    %133 = vector.extract_strided_slice %131 {offsets = [0, 0], sizes = [3, 128], strides = [1, 1]} : vector<4x128xbf16> to vector<3x128xbf16>
    %134 = tpu.concatenate %132, %133 in 0 : vector<1x128xbf16>, vector<3x128xbf16> -> vector<4x128xbf16>
    %135 = vector.extract_strided_slice %131 {offsets = [1, 0], sizes = [3, 128], strides = [1, 1]} : vector<4x128xbf16> to vector<3x128xbf16>
    %136 = tpu.concatenate %135, %132 in 0 : vector<3x128xbf16>, vector<1x128xbf16> -> vector<4x128xbf16>
    %cst_83 = arith.constant 0.000000e+00 : f32
    %137 = vector.broadcast %cst_83 : f32 to vector<4x32xf32>
    %c0_84 = arith.constant 0 : index
    %c0_85 = arith.constant 0 : index
    %c0_86 = arith.constant 0 : index
    %138 = vector.load %arg12[%c0_84, %c0_85, %c0_86] : memref<3x128x32xbf16, #tpu.memory_space<vmem>>, vector<1x128x32xbf16>
    %139 = vector.shape_cast %138 : vector<1x128x32xbf16> to vector<128x32xbf16>
    %cst_87 = arith.constant dense<0.000000e+00> : vector<4x32xf32>
    %140 = tpu.matmul %134, %139, %cst_87 {dimension_numbers = #tpu.dot_dimension_numbers<[1], [0], [0], [1], [0, 0, 1, 1], [], []>} : vector<4x128xbf16>, vector<128x32xbf16>, vector<4x32xf32> -> vector<4x32xf32>
    %141 = arith.addf %137, %140 : vector<4x32xf32>
    %c1_88 = arith.constant 1 : index
    %c0_89 = arith.constant 0 : index
    %c0_90 = arith.constant 0 : index
    %142 = vector.load %arg12[%c1_88, %c0_89, %c0_90] : memref<3x128x32xbf16, #tpu.memory_space<vmem>>, vector<1x128x32xbf16>
    %143 = vector.shape_cast %142 : vector<1x128x32xbf16> to vector<128x32xbf16>
    %cst_91 = arith.constant dense<0.000000e+00> : vector<4x32xf32>
    %144 = tpu.matmul %131, %143, %cst_91 {dimension_numbers = #tpu.dot_dimension_numbers<[1], [0], [0], [1], [0, 0, 1, 1], [], []>} : vector<4x128xbf16>, vector<128x32xbf16>, vector<4x32xf32> -> vector<4x32xf32>
    %145 = arith.addf %141, %144 : vector<4x32xf32>
    %c2_92 = arith.constant 2 : index
    %c0_93 = arith.constant 0 : index
    %c0_94 = arith.constant 0 : index
    %146 = vector.load %arg12[%c2_92, %c0_93, %c0_94] : memref<3x128x32xbf16, #tpu.memory_space<vmem>>, vector<1x128x32xbf16>
    %147 = vector.shape_cast %146 : vector<1x128x32xbf16> to vector<128x32xbf16>
    %cst_95 = arith.constant dense<0.000000e+00> : vector<4x32xf32>
    %148 = tpu.matmul %136, %147, %cst_95 {dimension_numbers = #tpu.dot_dimension_numbers<[1], [0], [0], [1], [0, 0, 1, 1], [], []>} : vector<4x128xbf16>, vector<128x32xbf16>, vector<4x32xf32> -> vector<4x32xf32>
    %149 = arith.addf %145, %148 : vector<4x32xf32>
    %c0_96 = arith.constant 0 : index
    %c0_97 = arith.constant 0 : index
    %150 = vector.load %arg13[%c0_96, %c0_97] : memref<1x32xf32, #tpu.memory_space<vmem>>, vector<1x32xf32>
    %151 = vector.broadcast %150 : vector<1x32xf32> to vector<4x32xf32>
    %152 = arith.addf %149, %151 : vector<4x32xf32>
    %cst_98 = arith.constant 0.000000e+00 : f32
    %153 = vector.broadcast %cst_98 : f32 to vector<4x32xf32>
    %154 = arith.maximumf %152, %153 : vector<4x32xf32>
    %155 = arith.truncf %154 : vector<4x32xf32> to vector<4x32xbf16>
    %c0_99 = arith.constant 0 : index
    %c0_100 = arith.constant 0 : index
    %156 = vector.load %arg14[%c0_99, %c0_100] : memref<8x32xbf16, #tpu.memory_space<vmem>>, vector<8x32xbf16>
    %157 = vector.extract_strided_slice %155 {offsets = [0, 0], sizes = [4, 8], strides = [1, 1]} : vector<4x32xbf16> to vector<4x8xbf16>
    %cst_101 = arith.constant dense<0.000000e+00> : vector<4x32xf32>
    %158 = tpu.matmul %157, %156, %cst_101 {dimension_numbers = #tpu.dot_dimension_numbers<[1], [0], [0], [1], [0, 0, 1, 1], [], []>} : vector<4x8xbf16>, vector<8x32xbf16>, vector<4x32xf32> -> vector<4x32xf32>
    %159 = vector.extract_strided_slice %155 {offsets = [0, 8], sizes = [4, 8], strides = [1, 1]} : vector<4x32xbf16> to vector<4x8xbf16>
    %cst_102 = arith.constant dense<0.000000e+00> : vector<4x32xf32>
    %160 = tpu.matmul %159, %156, %cst_102 {dimension_numbers = #tpu.dot_dimension_numbers<[1], [0], [0], [1], [0, 0, 1, 1], [], []>} : vector<4x8xbf16>, vector<8x32xbf16>, vector<4x32xf32> -> vector<4x32xf32>
    %161 = vector.extract_strided_slice %155 {offsets = [0, 16], sizes = [4, 8], strides = [1, 1]} : vector<4x32xbf16> to vector<4x8xbf16>
    %cst_103 = arith.constant dense<0.000000e+00> : vector<4x32xf32>
    %162 = tpu.matmul %161, %156, %cst_103 {dimension_numbers = #tpu.dot_dimension_numbers<[1], [0], [0], [1], [0, 0, 1, 1], [], []>} : vector<4x8xbf16>, vector<8x32xbf16>, vector<4x32xf32> -> vector<4x32xf32>
    %163 = vector.extract_strided_slice %155 {offsets = [0, 24], sizes = [4, 8], strides = [1, 1]} : vector<4x32xbf16> to vector<4x8xbf16>
    %cst_104 = arith.constant dense<0.000000e+00> : vector<4x32xf32>
    %164 = tpu.matmul %163, %156, %cst_104 {dimension_numbers = #tpu.dot_dimension_numbers<[1], [0], [0], [1], [0, 0, 1, 1], [], []>} : vector<4x8xbf16>, vector<8x32xbf16>, vector<4x32xf32> -> vector<4x32xf32>
    %165 = tpu.concatenate %158, %160, %162, %164 in 1 : vector<4x32xf32>, vector<4x32xf32>, vector<4x32xf32>, vector<4x32xf32> -> vector<4x128xf32>
    %c0_105 = arith.constant 0 : index
    %c0_106 = arith.constant 0 : index
    %166 = vector.load %arg15[%c0_105, %c0_106] : memref<1x128xf32, #tpu.memory_space<vmem>>, vector<1x128xf32>
    %167 = vector.broadcast %166 : vector<1x128xf32> to vector<4x128xf32>
    %168 = arith.addf %165, %167 : vector<4x128xf32>
    %169 = arith.addf %168, %130 : vector<4x128xf32>
    %cst_107 = arith.constant 0.000000e+00 : f32
    %170 = vector.broadcast %cst_107 : f32 to vector<4x128xf32>
    %171 = arith.maximumf %169, %170 : vector<4x128xf32>
    %c0_108 = arith.constant 0 : index
    %c0_109 = arith.constant 0 : index
    %c0_110 = arith.constant 0 : index
    %172 = vector.load %arg16[%c0_108, %c0_109, %c0_110] : memref<1x4x128xf32, #tpu.memory_space<vmem>>, vector<1x4x128xf32>
    %173 = vector.shape_cast %172 : vector<1x4x128xf32> to vector<4x128xf32>
    %174 = vector.shape_cast %171 : vector<4x128xf32> to vector<1x4x128xf32>
    tpu.vector_store %arg16[%c0_108, %c0_109, %c0_110], %174 {strides = array<i32>} : memref<1x4x128xf32, #tpu.memory_space<vmem>>, vector<1x4x128xf32>,
    return
  }
  func.func @transform_0(%arg0: i32) -> (i32, i32, i32) {
    %c0_i32 = arith.constant 0 : i32
    %c0_i32_0 = arith.constant 0 : i32
    %c0_i32_1 = arith.constant 0 : i32
    return %arg0, %c0_i32, %c0_i32_0 : i32, i32, i32
  }
  func.func @transform_1(%arg0: i32) -> (i32, i32, i32) {
    %c0_i32 = arith.constant 0 : i32
    %c0_i32_0 = arith.constant 0 : i32
    %c0_i32_1 = arith.constant 0 : i32
    %c0_i32_2 = arith.constant 0 : i32
    return %c0_i32, %c0_i32_0, %c0_i32_1 : i32, i32, i32
  }
  func.func @transform_2(%arg0: i32) -> (i32, i32) {
    %c0_i32 = arith.constant 0 : i32
    %c0_i32_0 = arith.constant 0 : i32
    %c0_i32_1 = arith.constant 0 : i32
    return %c0_i32, %c0_i32_0 : i32, i32
  }
  func.func @transform_3(%arg0: i32) -> (i32, i32, i32) {
    %c0_i32 = arith.constant 0 : i32
    %c0_i32_0 = arith.constant 0 : i32
    %c0_i32_1 = arith.constant 0 : i32
    %c0_i32_2 = arith.constant 0 : i32
    return %c0_i32, %c0_i32_0, %c0_i32_1 : i32, i32, i32
  }
  func.func @transform_4(%arg0: i32) -> (i32, i32) {
    %c0_i32 = arith.constant 0 : i32
    %c0_i32_0 = arith.constant 0 : i32
    %c0_i32_1 = arith.constant 0 : i32
    return %c0_i32, %c0_i32_0 : i32, i32
  }
  func.func @transform_5(%arg0: i32) -> (i32, i32, i32) {
    %c0_i32 = arith.constant 0 : i32
    %c0_i32_0 = arith.constant 0 : i32
    %c0_i32_1 = arith.constant 0 : i32
    %c0_i32_2 = arith.constant 0 : i32
    return %c0_i32, %c0_i32_0, %c0_i32_1 : i32, i32, i32
  }
  func.func @transform_6(%arg0: i32) -> (i32, i32) {
    %c0_i32 = arith.constant 0 : i32
    %c0_i32_0 = arith.constant 0 : i32
    %c0_i32_1 = arith.constant 0 : i32
    return %c0_i32, %c0_i32_0 : i32, i32
  }
  func.func @transform_7(%arg0: i32) -> (i32, i32, i32) {
    %c0_i32 = arith.constant 0 : i32
    %c0_i32_0 = arith.constant 0 : i32
    %c0_i32_1 = arith.constant 0 : i32
    %c0_i32_2 = arith.constant 0 : i32
    return %c0_i32, %c0_i32_0, %c0_i32_1 : i32, i32, i32
  }
  func.func @transform_8(%arg0: i32) -> (i32, i32) {
    %c0_i32 = arith.constant 0 : i32
    %c0_i32_0 = arith.constant 0 : i32
    %c0_i32_1 = arith.constant 0 : i32
    return %c0_i32, %c0_i32_0 : i32, i32
  }
  func.func @transform_9(%arg0: i32) -> (i32, i32) {
    %c0_i32 = arith.constant 0 : i32
    %c0_i32_0 = arith.constant 0 : i32
    %c0_i32_1 = arith.constant 0 : i32
    return %c0_i32, %c0_i32_0 : i32, i32
  }
  func.func @transform_10(%arg0: i32) -> (i32, i32) {
    %c0_i32 = arith.constant 0 : i32
    %c0_i32_0 = arith.constant 0 : i32
    %c0_i32_1 = arith.constant 0 : i32
    return %c0_i32, %c0_i32_0 : i32, i32
  }
  func.func @transform_11(%arg0: i32) -> (i32, i32, i32) {
    %c0_i32 = arith.constant 0 : i32
    %c0_i32_0 = arith.constant 0 : i32
    %c0_i32_1 = arith.constant 0 : i32
    %c0_i32_2 = arith.constant 0 : i32
    return %c0_i32, %c0_i32_0, %c0_i32_1 : i32, i32, i32
  }
  func.func @transform_12(%arg0: i32) -> (i32, i32) {
    %c0_i32 = arith.constant 0 : i32
    %c0_i32_0 = arith.constant 0 : i32
    %c0_i32_1 = arith.constant 0 : i32
    return %c0_i32, %c0_i32_0 : i32, i32
  }
  func.func @transform_13(%arg0: i32) -> (i32, i32) {
    %c0_i32 = arith.constant 0 : i32
    %c0_i32_0 = arith.constant 0 : i32
    %c0_i32_1 = arith.constant 0 : i32
    return %c0_i32, %c0_i32_0 : i32, i32
  }
  func.func @transform_14(%arg0: i32) -> (i32, i32) {
    %c0_i32 = arith.constant 0 : i32
    %c0_i32_0 = arith.constant 0 : i32
    %c0_i32_1 = arith.constant 0 : i32
    return %c0_i32, %c0_i32_0 : i32, i32
  }
  func.func @transform_15(%arg0: i32) -> (i32, i32, i32) {
    %c0_i32 = arith.constant 0 : i32
    %c0_i32_0 = arith.constant 0 : i32
    %c0_i32_1 = arith.constant 0 : i32
    return %arg0, %c0_i32, %c0_i32_0 : i32, i32, i32
  }
}

</mosaic_0001>

<llo_original>
// kernel: tile.38
$region0: #{tile.38}
  #allocation0 [shape = 's32[1]{0}', space=sflag, size = 0x4, scoped, tag = 'scoped memory for tile.38']
  %s0 = inlined_call_operand.vmem [shape: f32[16], index: 0, kind: input, shape index: {}]
  %s1 = inlined_call_operand.vmem [shape: f32[8,16], index: 1, kind: output, shape index: {}]
  // Predicated region
  $region2: #{tile.38} parent=0 // pred_check
    _
  $region3: #{tile.38} parent=0 // pred_check_branch
    %3 = sbr.rel (0) target = $region5
  $region4: #{tile.38} parent=0 // pred_region
    _
  $region5: #{tile.38} parent=0 // pred_fallthru
    _
  %v4 = vld [vmem:[%s0] ss:$0 sm:$0xff]
  %5 = vst [vmem:[%s1] sm:$0xff] %v4

// kernel: tile.39
$region0: #{tile.39}
  %s0 = inlined_call_operand.vmem [shape: f32[8,16], index: 0, kind: input, shape index: {}]
  %s1 = inlined_call_operand.vmem [shape: f32[1,128], index: 1, kind: output, shape index: {}]
  $region1: #{tile.39} parent=0
    #allocation0 [shape = 'u8[4096]{0}', space=vmem, size = 0x1000, scoped, tag = 'scoped mem for output reshape']
    %v2 = vld [vmem:[%s0] sm:$0x1]
    %vm3 = vcmask 130048
    %4 = vst.msk [vmem:[#allocation0] sm:$0x1] %vm3, %v2
    %s5 = scalar_lea.vmem %s0, 7
    %v6 = vld [vmem:[%s5] sm:$0x1]
    %7 = vrot.lane.b32.xlu0 %v6, 112
    %v8 = vpop.permute.xlu0 %7
    %vm9 = vcmask 1048448
    %10 = vst.msk [vmem:[#allocation0] sm:$0x1] %vm9, %v8
    %s11 = scalar_lea.vmem %s0, 6
    %v12 = vld [vmem:[%s11] sm:$0x1]
    %13 = vrot.lane.b32.xlu0 %v12, 96
    %v14 = vpop.permute.xlu0 %13
    %vm15 = vcmask 917248
    %16 = vst.msk [vmem:[#allocation0] sm:$0x1] %vm15, %v14
    %s17 = scalar_lea.vmem %s0, 5
    %v18 = vld [vmem:[%s17] sm:$0x1]
    %19 = vrot.lane.b32.xlu0 %v18, 80
    %v20 = vpop.permute.xlu0 %19
    %vm21 = vcmask 786048
    %22 = vst.msk [vmem:[#allocation0] sm:$0x1] %vm21, %v20
    %s23 = scalar_lea.vmem %s0, 4
    %v24 = vld [vmem:[%s23] sm:$0x1]
    %25 = vrot.lane.b32.xlu0 %v24, 64
    %v26 = vpop.permute.xlu0 %25
    %vm27 = vcmask 654848
    %28 = vst.msk [vmem:[#allocation0] sm:$0x1] %vm27, %v26
    %s29 = scalar_lea.vmem %s0, 3
    %v30 = vld [vmem:[%s29] sm:$0x1]
    %31 = vrot.lane.b32.xlu0 %v30, 48
    %v32 = vpop.permute.xlu0 %31
    %vm33 = vcmask 523648
    %34 = vst.msk [vmem:[#allocation0] sm:$0x1] %vm33, %v32
    %s35 = scalar_lea.vmem %s0, 2
    %v36 = vld [vmem:[%s35] sm:$0x1]
    %37 = vrot.lane.b32.xlu0 %v36, 32
    %v38 = vpop.permute.xlu0 %37
    %vm39 = vcmask 392448
    %40 = vst.msk [vmem:[#allocation0] sm:$0x1] %vm39, %v38
    %s41 = scalar_lea.vmem %s0, 1
    %v42 = vld [vmem:[%s41] sm:$0x1]
    %43 = vrot.lane.b32.xlu0 %v42, 16
    %v44 = vpop.permute.xlu0 %43
    %vm45 = vcmask 261248
    %46 = vst.msk [vmem:[#allocation0] sm:$0x1] %vm45, %v44
    %s48 = ssub.s32 2, 1
    %v49 = vld [vmem:[#allocation0] sm:%s48]
    %s51 = ssub.s32 2, 1
    %52 = vst [vmem:[%s1] sm:%s51] %v49

// kernel: tile.43
$region0: #{tile.43}
  #allocation0 [shape = 's32[1]{0}', space=sflag, size = 0x4, scoped, tag = 'scoped memory for tile.43']
  %s0 = inlined_call_operand.vmem [shape: f32[32], index: 0, kind: input, shape index: {}]
  %s1 = inlined_call_operand.vmem [shape: f32[4,32], index: 1, kind: output, shape index: {}]
  // Predicated region
  $region2: #{tile.43} parent=0 // pred_check
    _
  $region3: #{tile.43} parent=0 // pred_check_branch
    %3 = sbr.rel (0) target = $region5
  $region4: #{tile.43} parent=0 // pred_region
    _
  $region5: #{tile.43} parent=0 // pred_fallthru
    _
  %v4 = vld [vmem:[%s0] ss:$0 sm:$0xff]
  %5 = vst [vmem:[%s1] sm:$0xf] %v4

// kernel: tile.44
$region0: #{tile.44}
  %s0 = inlined_call_operand.vmem [shape: f32[4,32], index: 0, kind: input, shape index: {}]
  %s1 = inlined_call_operand.vmem [shape: f32[1,128], index: 1, kind: output, shape index: {}]
  $region1: #{tile.44} parent=0
    #allocation0 [shape = 'u8[4096]{0}', space=vmem, size = 0x1000, scoped, tag = 'scoped mem for output reshape']
    #allocation1 [shape = 'u8[4096]{0}', space=vmem, size = 0x1000, scoped, tag = 'scoped mem for input reshape']
    %s3 = ssub.s32 16, 1
    %v4 = vld [vmem:[%s0] sm:%s3]
    %5 = vst [vmem:[#allocation1] sm:%s3] %v4
    %v6 = vld [vmem:[#allocation1] sm:$0x1]
    %vm7 = vcmask 261120
    %8 = vst.msk [vmem:[#allocation0] sm:$0x1] %vm7, %v6
    %s9 = scalar_lea.vmem [#allocation1], 3
    %v10 = vld [vmem:[%s9] sm:$0x1]
    %11 = vrot.lane.b32.xlu0 %v10, 96
    %v12 = vpop.permute.xlu0 %11
    %vm13 = vcmask 1048320
    %14 = vst.msk [vmem:[#allocation0] sm:$0x1] %vm13, %v12
    %s15 = scalar_lea.vmem [#allocation1], 2
    %v16 = vld [vmem:[%s15] sm:$0x1]
    %17 = vrot.lane.b32.xlu0 %v16, 64
    %v18 = vpop.permute.xlu0 %17
    %vm19 = vcmask 785920
    %20 = vst.msk [vmem:[#allocation0] sm:$0x1] %vm19, %v18
    %s21 = scalar_lea.vmem [#allocation1], 1
    %v22 = vld [vmem:[%s21] sm:$0x1]
    %23 = vrot.lane.b32.xlu0 %v22, 32
    %v24 = vpop.permute.xlu0 %23
    %vm25 = vcmask 523520
    %26 = vst.msk [vmem:[#allocation0] sm:$0x1] %vm25, %v24
    %s28 = ssub.s32 2, 1
    %v29 = vld [vmem:[#allocation0] sm:%s28]
    %s31 = ssub.s32 2, 1
    %32 = vst [vmem:[%s1] sm:%s31] %v29

// kernel: tile.53
$region0: #{tile.53}
  #allocation0 [shape = 's32[1]{0}', space=sflag, size = 0x4, scoped, tag = 'scoped memory for tile.53']
  %s0 = inlined_call_operand.vmem [shape: f32[8], index: 0, kind: input, shape index: {}]
  %s1 = inlined_call_operand.vmem [shape: f32[4,8], index: 1, kind: output, shape index: {}]
  // Predicated region
  $region2: #{tile.53} parent=0 // pred_check
    _
  $region3: #{tile.53} parent=0 // pred_check_branch
    %3 = sbr.rel (0) target = $region5
  $region4: #{tile.53} parent=0 // pred_region
    _
  $region5: #{tile.53} parent=0 // pred_fallthru
    _
  %v4 = vld [vmem:[%s0] ss:$0 sm:$0xff]
  %5 = vst [vmem:[%s1] sm:$0xf] %v4

// kernel: tile.54
$region0: #{tile.54}
  %s0 = inlined_call_operand.vmem [shape: f32[4,8], index: 0, kind: input, shape index: {}]
  %s1 = inlined_call_operand.vmem [shape: f32[1,32], index: 1, kind: output, shape index: {}]
  $region1: #{tile.54} parent=0
    #allocation0 [shape = 'u8[4096]{0}', space=vmem, size = 0x1000, scoped, tag = 'scoped mem for output reshape']
    #allocation1 [shape = 'u8[4096]{0}', space=vmem, size = 0x1000, scoped, tag = 'scoped mem for input reshape']
    %s3 = ssub.s32 16, 1
    %v4 = vld [vmem:[%s0] sm:%s3]
    %5 = vst [vmem:[#allocation1] sm:%s3] %v4
    %v6 = vld [vmem:[#allocation1] sm:$0x1]
    %vm7 = vcmask 64512
    %8 = vst.msk [vmem:[#allocation0] sm:$0x1] %vm7, %v6
    %s9 = scalar_lea.vmem [#allocation1], 3
    %v10 = vld [vmem:[%s9] sm:$0x1]
    %11 = vrot.lane.b32.xlu0 %v10, 24
    %v12 = vpop.permute.xlu0 %11
    %vm13 = vcmask 261312
    %14 = vst.msk [vmem:[#allocation0] sm:$0x1] %vm13, %v12
    %s15 = scalar_lea.vmem [#allocation1], 2
    %v16 = vld [vmem:[%s15] sm:$0x1]
    %17 = vrot.lane.b32.xlu0 %v16, 16
    %v18 = vpop.permute.xlu0 %17
    %vm19 = vcmask 195712
    %20 = vst.msk [vmem:[#allocation0] sm:$0x1] %vm19, %v18
    %s21 = scalar_lea.vmem [#allocation1], 1
    %v22 = vld [vmem:[%s21] sm:$0x1]
    %23 = vrot.lane.b32.xlu0 %v22, 8
    %v24 = vpop.permute.xlu0 %23
    %vm25 = vcmask 130112
    %26 = vst.msk [vmem:[#allocation0] sm:$0x1] %vm25, %v24
    %s28 = ssub.s32 2, 1
    %v29 = vld [vmem:[#allocation0] sm:%s28]
    %s31 = ssub.s32 2, 1
    %32 = vst [vmem:[%s1] sm:%s31] %v29

// kernel: deepmind_encoder_forward.1
$region0: #{deepmind_encoder_forward.1}
  #allocation0 [shape = 'u32[]', space=smem, size = 0x4, offset = 0x4, fixed_abs, tag = 'smem constant byte address 0x4 - core index']
  #allocation1 [shape = 'u32[72,128]{1,0:T(1,128)}', space=vmem, size = 0x9000, scoped, tag = 'internal scratch']
  %s0 = inlined_call_operand.vmem [shape: bf16[2,18,128], index: 0, kind: input, shape index: {}]
  %s1 = inlined_call_operand.vmem [shape: bf16[4,128,128], index: 1, kind: input, shape index: {}]
  %s2 = inlined_call_operand.vmem [shape: f32[1,128], index: 2, kind: input, shape index: {}]
  %s3 = inlined_call_operand.vmem [shape: bf16[4,128,128], index: 3, kind: input, shape index: {}]
  %s4 = inlined_call_operand.vmem [shape: f32[1,128], index: 4, kind: input, shape index: {}]
  %s5 = inlined_call_operand.vmem [shape: bf16[3,128,128], index: 5, kind: input, shape index: {}]
  %s6 = inlined_call_operand.vmem [shape: f32[1,128], index: 6, kind: input, shape index: {}]
  %s7 = inlined_call_operand.vmem [shape: bf16[3,128,32], index: 7, kind: input, shape index: {}]
  %s8 = inlined_call_operand.vmem [shape: f32[1,32], index: 8, kind: input, shape index: {}]
  %s9 = inlined_call_operand.vmem [shape: bf16[8,32], index: 9, kind: input, shape index: {}]
  %s10 = inlined_call_operand.vmem [shape: f32[1,128], index: 10, kind: input, shape index: {}]
  %s11 = inlined_call_operand.vmem [shape: bf16[3,128,32], index: 11, kind: input, shape index: {}]
  %s12 = inlined_call_operand.vmem [shape: f32[1,32], index: 12, kind: input, shape index: {}]
  %s13 = inlined_call_operand.vmem [shape: bf16[8,32], index: 13, kind: input, shape index: {}]
  %s14 = inlined_call_operand.vmem [shape: f32[1,128], index: 14, kind: input, shape index: {}]
  %s15 = inlined_call_operand.vmem [shape: f32[2,4,128], index: 15, kind: output, shape index: {}]
  %s16 = sld [smem:[#allocation0]]
  $region93: #{deepmind_encoder_forward.1} parent=0
    _
  %s18 = ssub.s32 1, %s16
  %s19 = scalar_select 0, %s18, %s16
  loop: start=0, step=1, limit=4
  $region2: #{deepmind_encoder_forward.1} parent=0 // loop_pre_header
    _
  $region3: #{deepmind_encoder_forward.1} parent=0 // loop_header
    %s21 = sphi 0, %s25
    %p22 = scmp.ge.s32.totalorder %s21, 4
    %s31 = sphi 0, %s33
    %s34 = sphi 0, %s31
    %s35 = sphi 0, %s34
    %s51 = sphi 0, %s35
    %s55 = sphi 0, %s55
    %s57 = sphi 0, %s55
    %s58 = sphi 0, %s57
    %s72 = sphi 0, %s58
    %s76 = sphi 0, %s76
    %s78 = sphi 0, %s76
    %s79 = sphi 0, %s78
    %s93 = sphi 0, %s79
    %s97 = sphi 0, %s97
    %s99 = sphi 0, %s97
    %s100 = sphi 0, %s99
    %s114 = sphi 0, %s100
    %s118 = sphi 0, %s118
    %s120 = sphi 0, %s118
    %s121 = sphi 0, %s120
    %s135 = sphi 0, %s121
    %s139 = sphi 0, %s139
    %s141 = sphi 0, %s139
    %s142 = sphi 0, %s141
    %s156 = sphi 0, %s142
    %s160 = sphi 0, %s160
    %s162 = sphi 0, %s160
    %s163 = sphi 0, %s162
    %s177 = sphi 0, %s163
    %s181 = sphi 0, %s181
    %s183 = sphi 0, %s181
    %s184 = sphi 0, %s183
    %s198 = sphi 0, %s184
    %s202 = sphi 0, %s202
    %s204 = sphi 0, %s202
    %s205 = sphi 0, %s204
    %s219 = sphi 0, %s205
    %s223 = sphi 0, %s223
    %s225 = sphi 0, %s223
    %s226 = sphi 0, %s225
    %s240 = sphi 0, %s226
    %s244 = sphi 0, %s244
    %s246 = sphi 0, %s244
    %s247 = sphi 0, %s246
    %s261 = sphi 0, %s247
    %s265 = sphi 0, %s265
    %s267 = sphi 0, %s265
    %s268 = sphi 0, %s267
    %s282 = sphi 0, %s268
    %s286 = sphi 0, %s286
    %s288 = sphi 0, %s286
    %s289 = sphi 0, %s288
    %s303 = sphi 0, %s289
    %s307 = sphi 0, %s307
    %s309 = sphi 0, %s307
    %s310 = sphi 0, %s309
    %s324 = sphi 0, %s310
    %s328 = sphi 0, %s328
    %s330 = sphi 0, %s328
    %s331 = sphi 0, %s330
    %s345 = sphi 0, %s331
    %s351 = sphi 0, %s353
    %s354 = sphi 0, %s351
    %s355 = sphi 0, %s354
    %s371 = sphi 0, %s355
  $region4: #{deepmind_encoder_forward.1} parent=0 // loop_header_branch
    %24 = sbr.rel (%p22) target = $region8
  $region5: #{deepmind_encoder_forward.1} parent=0 // loop_body
    %s26 = ssub.s32 %s21, 1
    %s27 = ssub.s32 %s21, 2
    %s28 = sadd.s32 %s21, 1
    %s29 = ssub.s32 %s21, %s28
    %p30 = scmp.eq.s32.totalorder %s29, 0
    %s32 = sadd.s32 %s31, 1
    %s33 = scalar_select %p30, %s31, %s32
    %p36 = pneg %p30
    %p37 = scmp.eq.s32.totalorder %s21, 1
    %p38 = por %p36, %p37
    %p39 = scmp.ne.s32.totalorder %s31, %s34
    %p40 = scmp.eq.s32.totalorder %s21, 0
    %p41 = por %p39, %p40
    %p42 = scmp.ne.s32.totalorder %s31, %s34
    %p43 = scmp.eq.s32.totalorder %s26, 1
    %p44 = por %p42, %p43
    %p45 = scmp.ne.s32.totalorder %s34, %s35
    %p46 = scmp.eq.s32.totalorder %s26, 0
    %p47 = por %p45, %p46
    %p48 = scmp.ne.s32.totalorder %s34, %s35
    %p49 = scmp.eq.s32.totalorder %s27, 1
    %p50 = por %p48, %p49
    %p52 = scmp.ne.s32.totalorder %s35, %s51
    %p53 = scmp.eq.s32.totalorder %s27, 0
    %p54 = por %p52, %p53
    %s56 = sadd.s32 %s55, 1
    %p59 = scmp.eq.s32.totalorder %s21, 1
    %p60 = scmp.ne.s32.totalorder %s55, %s57
    %p61 = scmp.eq.s32.totalorder %s21, 0
    %p62 = por %p60, %p61
    %p63 = scmp.ne.s32.totalorder %s55, %s57
    %p64 = scmp.eq.s32.totalorder %s26, 1
    %p65 = por %p63, %p64
    %p66 = scmp.ne.s32.totalorder %s57, %s58
    %p67 = scmp.eq.s32.totalorder %s26, 0
    %p68 = por %p66, %p67
    %p69 = scmp.ne.s32.totalorder %s57, %s58
    %p70 = scmp.eq.s32.totalorder %s27, 1
    %p71 = por %p69, %p70
    %p73 = scmp.ne.s32.totalorder %s58, %s72
    %p74 = scmp.eq.s32.totalorder %s27, 0
    %p75 = por %p73, %p74
    %s77 = sadd.s32 %s76, 1
    %p80 = scmp.eq.s32.totalorder %s21, 1
    %p81 = scmp.ne.s32.totalorder %s76, %s78
    %p82 = scmp.eq.s32.totalorder %s21, 0
    %p83 = por %p81, %p82
    %p84 = scmp.ne.s32.totalorder %s76, %s78
    %p85 = scmp.eq.s32.totalorder %s26, 1
    %p86 = por %p84, %p85
    %p87 = scmp.ne.s32.totalorder %s78, %s79
    %p88 = scmp.eq.s32.totalorder %s26, 0
    %p89 = por %p87, %p88
    %p90 = scmp.ne.s32.totalorder %s78, %s79
    %p91 = scmp.eq.s32.totalorder %s27, 1
    %p92 = por %p90, %p91
    %p94 = scmp.ne.s32.totalorder %s79, %s93
    %p95 = scmp.eq.s32.totalorder %s27, 0
    %p96 = por %p94, %p95
    %s98 = sadd.s32 %s97, 1
    %p101 = scmp.eq.s32.totalorder %s21, 1
    %p102 = scmp.ne.s32.totalorder %s97, %s99
    %p103 = scmp.eq.s32.totalorder %s21, 0
    %p104 = por %p102, %p103
    %p105 = scmp.ne.s32.totalorder %s97, %s99
    %p106 = scmp.eq.s32.totalorder %s26, 1
    %p107 = por %p105, %p106
    %p108 = scmp.ne.s32.totalorder %s99, %s100
    %p109 = scmp.eq.s32.totalorder %s26, 0
    %p110 = por %p108, %p109
    %p111 = scmp.ne.s32.totalorder %s99, %s100
    %p112 = scmp.eq.s32.totalorder %s27, 1
    %p113 = por %p111, %p112
    %p115 = scmp.ne.s32.totalorder %s100, %s114
    %p116 = scmp.eq.s32.totalorder %s27, 0
    %p117 = por %p115, %p116
    %s119 = sadd.s32 %s118, 1
    %p122 = scmp.eq.s32.totalorder %s21, 1
    %p123 = scmp.ne.s32.totalorder %s118, %s120
    %p124 = scmp.eq.s32.totalorder %s21, 0
    %p125 = por %p123, %p124
    %p126 = scmp.ne.s32.totalorder %s118, %s120
    %p127 = scmp.eq.s32.totalorder %s26, 1
    %p128 = por %p126, %p127
    %p129 = scmp.ne.s32.totalorder %s120, %s121
    %p130 = scmp.eq.s32.totalorder %s26, 0
    %p131 = por %p129, %p130
    %p132 = scmp.ne.s32.totalorder %s120, %s121
    %p133 = scmp.eq.s32.totalorder %s27, 1
    %p134 = por %p132, %p133
    %p136 = scmp.ne.s32.totalorder %s121, %s135
    %p137 = scmp.eq.s32.totalorder %s27, 0
    %p138 = por %p136, %p137
    %s140 = sadd.s32 %s139, 1
    %p143 = scmp.eq.s32.totalorder %s21, 1
    %p144 = scmp.ne.s32.totalorder %s139, %s141
    %p145 = scmp.eq.s32.totalorder %s21, 0
    %p146 = por %p144, %p145
    %p147 = scmp.ne.s32.totalorder %s139, %s141
    %p148 = scmp.eq.s32.totalorder %s26, 1
    %p149 = por %p147, %p148
    %p150 = scmp.ne.s32.totalorder %s141, %s142
    %p151 = scmp.eq.s32.totalorder %s26, 0
    %p152 = por %p150, %p151
    %p153 = scmp.ne.s32.totalorder %s141, %s142
    %p154 = scmp.eq.s32.totalorder %s27, 1
    %p155 = por %p153, %p154
    %p157 = scmp.ne.s32.totalorder %s142, %s156
    %p158 = scmp.eq.s32.totalorder %s27, 0
    %p159 = por %p157, %p158
    %s161 = sadd.s32 %s160, 1
    %p164 = scmp.eq.s32.totalorder %s21, 1
    %p165 = scmp.ne.s32.totalorder %s160, %s162
    %p166 = scmp.eq.s32.totalorder %s21, 0
    %p167 = por %p165, %p166
    %p168 = scmp.ne.s32.totalorder %s160, %s162
    %p169 = scmp.eq.s32.totalorder %s26, 1
    %p170 = por %p168, %p169
    %p171 = scmp.ne.s32.totalorder %s162, %s163
    %p172 = scmp.eq.s32.totalorder %s26, 0
    %p173 = por %p171, %p172
    %p174 = scmp.ne.s32.totalorder %s162, %s163
    %p175 = scmp.eq.s32.totalorder %s27, 1
    %p176 = por %p174, %p175
    %p178 = scmp.ne.s32.totalorder %s163, %s177
    %p179 = scmp.eq.s32.totalorder %s27, 0
    %p180 = por %p178, %p179
    %s182 = sadd.s32 %s181, 1
    %p185 = scmp.eq.s32.totalorder %s21, 1
    %p186 = scmp.ne.s32.totalorder %s181, %s183
    %p187 = scmp.eq.s32.totalorder %s21, 0
    %p188 = por %p186, %p187
    %p189 = scmp.ne.s32.totalorder %s181, %s183
    %p190 = scmp.eq.s32.totalorder %s26, 1
    %p191 = por %p189, %p190
    %p192 = scmp.ne.s32.totalorder %s183, %s184
    %p193 = scmp.eq.s32.totalorder %s26, 0
    %p194 = por %p192, %p193
    %p195 = scmp.ne.s32.totalorder %s183, %s184
    %p196 = scmp.eq.s32.totalorder %s27, 1
    %p197 = por %p195, %p196
    %p199 = scmp.ne.s32.totalorder %s184, %s198
    %p200 = scmp.eq.s32.totalorder %s27, 0
    %p201 = por %p199, %p200
    %s203 = sadd.s32 %s202, 1
    %p206 = scmp.eq.s32.totalorder %s21, 1
    %p207 = scmp.ne.s32.totalorder %s202, %s204
    %p208 = scmp.eq.s32.totalorder %s21, 0
    %p209 = por %p207, %p208
    %p210 = scmp.ne.s32.totalorder %s202, %s204
    %p211 = scmp.eq.s32.totalorder %s26, 1
    %p212 = por %p210, %p211
    %p213 = scmp.ne.s32.totalorder %s204, %s205
    %p214 = scmp.eq.s32.totalorder %s26, 0
    %p215 = por %p213, %p214
    %p216 = scmp.ne.s32.totalorder %s204, %s205
    %p217 = scmp.eq.s32.totalorder %s27, 1
    %p218 = por %p216, %p217
    %p220 = scmp.ne.s32.totalorder %s205, %s219
    %p221 = scmp.eq.s32.totalorder %s27, 0
    %p222 = por %p220, %p221
    %s224 = sadd.s32 %s223, 1
    %p227 = scmp.eq.s32.totalorder %s21, 1
    %p228 = scmp.ne.s32.totalorder %s223, %s225
    %p229 = scmp.eq.s32.totalorder %s21, 0
    %p230 = por %p228, %p229
    %p231 = scmp.ne.s32.totalorder %s223, %s225
    %p232 = scmp.eq.s32.totalorder %s26, 1
    %p233 = por %p231, %p232
    %p234 = scmp.ne.s32.totalorder %s225, %s226
    %p235 = scmp.eq.s32.totalorder %s26, 0
    %p236 = por %p234, %p235
    %p237 = scmp.ne.s32.totalorder %s225, %s226
    %p238 = scmp.eq.s32.totalorder %s27, 1
    %p239 = por %p237, %p238
    %p241 = scmp.ne.s32.totalorder %s226, %s240
    %p242 = scmp.eq.s32.totalorder %s27, 0
    %p243 = por %p241, %p242
    %s245 = sadd.s32 %s244, 1
    %p248 = scmp.eq.s32.totalorder %s21, 1
    %p249 = scmp.ne.s32.totalorder %s244, %s246
    %p250 = scmp.eq.s32.totalorder %s21, 0
    %p251 = por %p249, %p250
    %p252 = scmp.ne.s32.totalorder %s244, %s246
    %p253 = scmp.eq.s32.totalorder %s26, 1
    %p254 = por %p252, %p253
    %p255 = scmp.ne.s32.totalorder %s246, %s247
    %p256 = scmp.eq.s32.totalorder %s26, 0
    %p257 = por %p255, %p256
    %p258 = scmp.ne.s32.totalorder %s246, %s247
    %p259 = scmp.eq.s32.totalorder %s27, 1
    %p260 = por %p258, %p259
    %p262 = scmp.ne.s32.totalorder %s247, %s261
    %p263 = scmp.eq.s32.totalorder %s27, 0
    %p264 = por %p262, %p263
    %s266 = sadd.s32 %s265, 1
    %p269 = scmp.eq.s32.totalorder %s21, 1
    %p270 = scmp.ne.s32.totalorder %s265, %s267
    %p271 = scmp.eq.s32.totalorder %s21, 0
    %p272 = por %p270, %p271
    %p273 = scmp.ne.s32.totalorder %s265, %s267
    %p274 = scmp.eq.s32.totalorder %s26, 1
    %p275 = por %p273, %p274
    %p276 = scmp.ne.s32.totalorder %s267, %s268
    %p277 = scmp.eq.s32.totalorder %s26, 0
    %p278 = por %p276, %p277
    %p279 = scmp.ne.s32.totalorder %s267, %s268
    %p280 = scmp.eq.s32.totalorder %s27, 1
    %p281 = por %p279, %p280
    %p283 = scmp.ne.s32.totalorder %s268, %s282
    %p284 = scmp.eq.s32.totalorder %s27, 0
    %p285 = por %p283, %p284
    %s287 = sadd.s32 %s286, 1
    %p290 = scmp.eq.s32.totalorder %s21, 1
    %p291 = scmp.ne.s32.totalorder %s286, %s288
    %p292 = scmp.eq.s32.totalorder %s21, 0
    %p293 = por %p291, %p292
    %p294 = scmp.ne.s32.totalorder %s286, %s288
    %p295 = scmp.eq.s32.totalorder %s26, 1
    %p296 = por %p294, %p295
    %p297 = scmp.ne.s32.totalorder %s288, %s289
    %p298 = scmp.eq.s32.totalorder %s26, 0
    %p299 = por %p297, %p298
    %p300 = scmp.ne.s32.totalorder %s288, %s289
    %p301 = scmp.eq.s32.totalorder %s27, 1
    %p302 = por %p300, %p301
    %p304 = scmp.ne.s32.totalorder %s289, %s303
    %p305 = scmp.eq.s32.totalorder %s27, 0
    %p306 = por %p304, %p305
    %s308 = sadd.s32 %s307, 1
    %p311 = scmp.eq.s32.totalorder %s21, 1
    %p312 = scmp.ne.s32.totalorder %s307, %s309
    %p313 = scmp.eq.s32.totalorder %s21, 0
    %p314 = por %p312, %p313
    %p315 = scmp.ne.s32.totalorder %s307, %s309
    %p316 = scmp.eq.s32.totalorder %s26, 1
    %p317 = por %p315, %p316
    %p318 = scmp.ne.s32.totalorder %s309, %s310
    %p319 = scmp.eq.s32.totalorder %s26, 0
    %p320 = por %p318, %p319
    %p321 = scmp.ne.s32.totalorder %s309, %s310
    %p322 = scmp.eq.s32.totalorder %s27, 1
    %p323 = por %p321, %p322
    %p325 = scmp.ne.s32.totalorder %s310, %s324
    %p326 = scmp.eq.s32.totalorder %s27, 0
    %p327 = por %p325, %p326
    %s329 = sadd.s32 %s328, 1
    %p332 = scmp.eq.s32.totalorder %s21, 1
    %p333 = scmp.ne.s32.totalorder %s328, %s330
    %p334 = scmp.eq.s32.totalorder %s21, 0
    %p335 = por %p333, %p334
    %p336 = scmp.ne.s32.totalorder %s328, %s330
    %p337 = scmp.eq.s32.totalorder %s26, 1
    %p338 = por %p336, %p337
    %p339 = scmp.ne.s32.totalorder %s330, %s331
    %p340 = scmp.eq.s32.totalorder %s26, 0
    %p341 = por %p339, %p340
    %p342 = scmp.ne.s32.totalorder %s330, %s331
    %p343 = scmp.eq.s32.totalorder %s27, 1
    %p344 = por %p342, %p343
    %p346 = scmp.ne.s32.totalorder %s331, %s345
    %p347 = scmp.eq.s32.totalorder %s27, 0
    %p348 = por %p346, %p347
    %s349 = ssub.s32 %s21, %s28
    %p350 = scmp.eq.s32.totalorder %s349, 0
    %s352 = sadd.s32 %s351, 1
    %s353 = scalar_select %p350, %s351, %s352
    %p356 = pneg %p350
    %p357 = scmp.eq.s32.totalorder %s21, 1
    %p358 = por %p356, %p357
    %p359 = scmp.ne.s32.totalorder %s351, %s354
    %p360 = scmp.eq.s32.totalorder %s21, 0
    %p361 = por %p359, %p360
    %p362 = scmp.ne.s32.totalorder %s351, %s354
    %p363 = scmp.eq.s32.totalorder %s26, 1
    %p364 = por %p362, %p363
    %p365 = scmp.ne.s32.totalorder %s354, %s355
    %p366 = scmp.eq.s32.totalorder %s26, 0
    %p367 = por %p365, %p366
    %p368 = scmp.ne.s32.totalorder %s354, %s355
    %p369 = scmp.eq.s32.totalorder %s27, 1
    %p370 = por %p368, %p369
    %p372 = scmp.ne.s32.totalorder %s355, %s371
    %p373 = scmp.eq.s32.totalorder %s27, 0
    %p374 = por %p372, %p373
    %p375 = scmp.le.s32.totalorder 1, %s21
    %p376 = scmp.lt.s32.totalorder %s21, 3
    %p377 = pnand %p375, %p376
    %p378 = pneg %p377
    // Predicated region
    $region9: #{deepmind_encoder_forward.1} parent=5 // pred_check
      _
    $region10: #{deepmind_encoder_forward.1} parent=5 // pred_check_branch
      %380 = sbr.rel (%p377) target = $region12
    $region11: #{deepmind_encoder_forward.1} parent=5 // pred_region
      %s381 = ssub.s32 %s21, 1
      // Predicated region
      $region13: #{deepmind_encoder_forward.1} parent=11 // pred_check
        %p382 = pneg %p68
      $region14: #{deepmind_encoder_forward.1} parent=11 // pred_check_branch
        %384 = sbr.rel (%p382) target = $region16
      $region15: #{deepmind_encoder_forward.1} parent=11 // pred_region
        _
      $region16: #{deepmind_encoder_forward.1} parent=11 // pred_fallthru
        _
      // Predicated region
      $region17: #{deepmind_encoder_forward.1} parent=11 // pred_check
        %p385 = pneg %p89
      $region18: #{deepmind_encoder_forward.1} parent=11 // pred_check_branch
        %387 = sbr.rel (%p385) target = $region20
      $region19: #{deepmind_encoder_forward.1} parent=11 // pred_region
        _
      $region20: #{deepmind_encoder_forward.1} parent=11 // pred_fallthru
        _
      // Predicated region
      $region21: #{deepmind_encoder_forward.1} parent=11 // pred_check
        %p388 = pneg %p110
      $region22: #{deepmind_encoder_forward.1} parent=11 // pred_check_branch
        %390 = sbr.rel (%p388) target = $region24
      $region23: #{deepmind_encoder_forward.1} parent=11 // pred_region
        _
      $region24: #{deepmind_encoder_forward.1} parent=11 // pred_fallthru
        _
      // Predicated region
      $region25: #{deepmind_encoder_forward.1} parent=11 // pred_check
        %p391 = pneg %p131
      $region26: #{deepmind_encoder_forward.1} parent=11 // pred_check_branch
        %393 = sbr.rel (%p391) target = $region28
      $region27: #{deepmind_encoder_forward.1} parent=11 // pred_region
        _
      $region28: #{deepmind_encoder_forward.1} parent=11 // pred_fallthru
        _
      // Predicated region
      $region29: #{deepmind_encoder_forward.1} parent=11 // pred_check
        %p394 = pneg %p152
      $region30: #{deepmind_encoder_forward.1} parent=11 // pred_check_branch
        %396 = sbr.rel (%p394) target = $region32
      $region31: #{deepmind_encoder_forward.1} parent=11 // pred_region
        _
      $region32: #{deepmind_encoder_forward.1} parent=11 // pred_fallthru
        _
      // Predicated region
      $region33: #{deepmind_encoder_forward.1} parent=11 // pred_check
        %p397 = pneg %p173
      $region34: #{deepmind_encoder_forward.1} parent=11 // pred_check_branch
        %399 = sbr.rel (%p397) target = $region36
      $region35: #{deepmind_encoder_forward.1} parent=11 // pred_region
        _
      $region36: #{deepmind_encoder_forward.1} parent=11 // pred_fallthru
        _
      // Predicated region
      $region37: #{deepmind_encoder_forward.1} parent=11 // pred_check
        %p400 = pneg %p194
      $region38: #{deepmind_encoder_forward.1} parent=11 // pred_check_branch
        %402 = sbr.rel (%p400) target = $region40
      $region39: #{deepmind_encoder_forward.1} parent=11 // pred_region
        _
      $region40: #{deepmind_encoder_forward.1} parent=11 // pred_fallthru
        _
      // Predicated region
      $region41: #{deepmind_encoder_forward.1} parent=11 // pred_check
        %p403 = pneg %p215
      $region42: #{deepmind_encoder_forward.1} parent=11 // pred_check_branch
        %405 = sbr.rel (%p403) target = $region44
      $region43: #{deepmind_encoder_forward.1} parent=11 // pred_region
        _
      $region44: #{deepmind_encoder_forward.1} parent=11 // pred_fallthru
        _
      // Predicated region
      $region45: #{deepmind_encoder_forward.1} parent=11 // pred_check
        %p406 = pneg %p236
      $region46: #{deepmind_encoder_forward.1} parent=11 // pred_check_branch
        %408 = sbr.rel (%p406) target = $region48
      $region47: #{deepmind_encoder_forward.1} parent=11 // pred_region
        _
      $region48: #{deepmind_encoder_forward.1} parent=11 // pred_fallthru
        _
      // Predicated region
      $region49: #{deepmind_encoder_forward.1} parent=11 // pred_check
        %p409 = pneg %p257
      $region50: #{deepmind_encoder_forward.1} parent=11 // pred_check_branch
        %411 = sbr.rel (%p409) target = $region52
      $region51: #{deepmind_encoder_forward.1} parent=11 // pred_region
        _
      $region52: #{deepmind_encoder_forward.1} parent=11 // pred_fallthru
        _
      // Predicated region
      $region53: #{deepmind_encoder_forward.1} parent=11 // pred_check
        %p412 = pneg %p278
      $region54: #{deepmind_encoder_forward.1} parent=11 // pred_check_branch
        %414 = sbr.rel (%p412) target = $region56
      $region55: #{deepmind_encoder_forward.1} parent=11 // pred_region
        _
      $region56: #{deepmind_encoder_forward.1} parent=11 // pred_fallthru
        _
      // Predicated region
      $region57: #{deepmind_encoder_forward.1} parent=11 // pred_check
        %p415 = pneg %p299
      $region58: #{deepmind_encoder_forward.1} parent=11 // pred_check_branch
        %417 = sbr.rel (%p415) target = $region60
      $region59: #{deepmind_encoder_forward.1} parent=11 // pred_region
        _
      $region60: #{deepmind_encoder_forward.1} parent=11 // pred_fallthru
        _
      // Predicated region
      $region61: #{deepmind_encoder_forward.1} parent=11 // pred_check
        %p418 = pneg %p320
      $region62: #{deepmind_encoder_forward.1} parent=11 // pred_check_branch
        %420 = sbr.rel (%p418) target = $region64
      $region63: #{deepmind_encoder_forward.1} parent=11 // pred_region
        _
      $region64: #{deepmind_encoder_forward.1} parent=11 // pred_fallthru
        _
      // Predicated region
      $region65: #{deepmind_encoder_forward.1} parent=11 // pred_check
        %p421 = pneg %p341
      $region66: #{deepmind_encoder_forward.1} parent=11 // pred_check_branch
        %423 = sbr.rel (%p421) target = $region68
      $region67: #{deepmind_encoder_forward.1} parent=11 // pred_region
        _
      $region68: #{deepmind_encoder_forward.1} parent=11 // pred_fallthru
        _
    $region12: #{deepmind_encoder_forward.1} parent=5 // pred_fallthru
      _
    %p424 = scmp.lt.s32.totalorder %s21, 2
    // Predicated region
    $region69: #{deepmind_encoder_forward.1} parent=5 // pred_check
      %p425 = pneg %p424
    $region70: #{deepmind_encoder_forward.1} parent=5 // pred_check_branch
      %427 = sbr.rel (%p425) target = $region72
    $region71: #{deepmind_encoder_forward.1} parent=5 // pred_region
      // Predicated region
      $region73: #{deepmind_encoder_forward.1} parent=71 // pred_check
        %p428 = pneg %p41
      $region74: #{deepmind_encoder_forward.1} parent=71 // pred_check_branch
        %430 = sbr.rel (%p428) target = $region76
      $region75: #{deepmind_encoder_forward.1} parent=71 // pred_region
        %p431 = scmp.lt.s32.totalorder %s21, 1
        %s432 = scalar_select %p431, %s21, 1
        %s433 = smul.addr %s432, 3
        %s434 = smul.addr %s433, 4
        %s435 = scalar_lea.vmem %s0, %s434
      $region76: #{deepmind_encoder_forward.1} parent=71 // pred_fallthru
        _
    $region72: #{deepmind_encoder_forward.1} parent=5 // pred_fallthru
      _
    %p436 = scmp.le.s32.totalorder 1, %s21
    %p437 = scmp.lt.s32.totalorder %s21, 3
    %p438 = pnand %p436, %p437
    %p439 = pneg %p438
    // Predicated region
    $region77: #{deepmind_encoder_forward.1} parent=5 // pred_check
      _
    $region78: #{deepmind_encoder_forward.1} parent=5 // pred_check_branch
      %441 = sbr.rel (%p438) target = $region80
    $region79: #{deepmind_encoder_forward.1} parent=5 // pred_region
      %s442 = ssub.s32 %s21, 1
      %p443 = scmp.lt.s32.totalorder %s26, 1
      %s444 = scalar_select %p443, %s26, 1
      %s445 = smul.addr %s444, 3
      %s446 = smul.addr %s445, 4
      %s447 = scalar_lea.vmem %s0, %s446
      %p448 = pneg %p47
      %p449 = pneg %p44
      %p450 = pneg %p68
      %p451 = pneg %p65
      %p452 = pneg %p89
      %p453 = pneg %p86
      %p454 = pneg %p110
      %p455 = pneg %p107
      %p456 = pneg %p131
      %p457 = pneg %p128
      %p458 = pneg %p152
      %p459 = pneg %p149
      %p460 = pneg %p173
      %p461 = pneg %p170
      %p462 = pneg %p194
      %p463 = pneg %p191
      %p464 = pneg %p215
      %p465 = pneg %p212
      %p466 = pneg %p236
      %p467 = pneg %p233
      %p468 = pneg %p257
      %p469 = pneg %p254
      %p470 = pneg %p278
      %p471 = pneg %p275
      %p472 = pneg %p299
      %p473 = pneg %p296
      %p474 = pneg %p320
      %p475 = pneg %p317
      %p476 = pneg %p341
      %p477 = pneg %p338
      %p478 = pneg %p367
      %p479 = pneg %p364
      %p480 = scmp.lt.s32.totalorder %s26, 1
      %s481 = scalar_select %p480, %s26, 1
      %s482 = smul.addr %s481, 4
      %s483 = scalar_lea.vmem %s15, %s482
      %p484 = scmp.lt.s32.totalorder %s26, 1
      %s485 = scalar_select %p484, %s26, 1
      %s486 = smul.addr %s485, 3
      %s487 = smul.addr %s486, 4
      %s488 = scalar_lea.vmem %s0, %s487
      %p489 = scmp.lt.s32.totalorder %s26, 1
      %s490 = scalar_select %p489, %s26, 1
      %s491 = smul.addr %s490, 4
      %s492 = scalar_lea.vmem %s15, %s491
      %v494 = vld [vmem:[%s488] sm:$0xf]
      %v495 = vld [vmem:[%s488 + $0x4] sm:$0xf]
      %v496 = vld [vmem:[%s488 + $0x8] sm:$0x1]
      %v498 = vunpack.c.l.b16 %v495
      %v499 = vpack.c.b16 %v498, %v498
      %v500 = vrot.slane %v499, 7
      %vm501 = vcmask 1041408
      %v504 = vsel %vm501, %v494, %v500
      %v506 = vld [vmem:[%s1] sm:$0xf]
      %v507 = vld [vmem:[%s1 + $0x4] sm:$0xf]
      %v508 = vld [vmem:[%s1 + $0x8] sm:$0xf]
      %v509 = vld [vmem:[%s1 + $0xc] sm:$0xf]
      %v510 = vld [vmem:[%s1 + $0x10] sm:$0xf]
      %v511 = vld [vmem:[%s1 + $0x14] sm:$0xf]
      %v512 = vld [vmem:[%s1 + $0x18] sm:$0xf]
      %v513 = vld [vmem:[%s1 + $0x1c] sm:$0xf]
      %v514 = vld [vmem:[%s1 + $0x20] sm:$0xf]
      %v515 = vld [vmem:[%s1 + $0x24] sm:$0xf]
      %v516 = vld [vmem:[%s1 + $0x28] sm:$0xf]
      %v517 = vld [vmem:[%s1 + $0x2c] sm:$0xf]
      %v518 = vld [vmem:[%s1 + $0x30] sm:$0xf]
      %v519 = vld [vmem:[%s1 + $0x34] sm:$0xf]
      %v520 = vld [vmem:[%s1 + $0x38] sm:$0xf]
      %v521 = vld [vmem:[%s1 + $0x3c] sm:$0xf]
      %v523 = vunpack.c.l.b16 %v494
      %v524 = vpack.c.b16 %v498, %v523
      %v526 = vshrl.u32 %v524, 16
      %v528 = vrot.slane %v526, 2
      %v529 = vshll.u32 %v524, 16
      %v531 = vrot.slane %v529, 3
      %v532 = vor.u32 %v528, %v531
      %v534 = vunpack.c.l.b16 %v496
      %v535 = vpack.c.b16 %v534, %v498
      %v536 = vrot.slane %v535, 1
      %v539 = vsel %vm501, %v532, %v536
      %s541 = scalar_lea.vmem %s1, 64
      %v542 = vld [vmem:[%s541] sm:$0xf]
      %v543 = vld [vmem:[%s541 + $0x4] sm:$0xf]
      %v544 = vld [vmem:[%s541 + $0x8] sm:$0xf]
      %v545 = vld [vmem:[%s541 + $0xc] sm:$0xf]
      %v546 = vld [vmem:[%s541 + $0x10] sm:$0xf]
      %v547 = vld [vmem:[%s541 + $0x14] sm:$0xf]
      %v548 = vld [vmem:[%s541 + $0x18] sm:$0xf]
      %v549 = vld [vmem:[%s541 + $0x1c] sm:$0xf]
      %v550 = vld [vmem:[%s541 + $0x20] sm:$0xf]
      %v551 = vld [vmem:[%s541 + $0x24] sm:$0xf]
      %v552 = vld [vmem:[%s541 + $0x28] sm:$0xf]
      %v553 = vld [vmem:[%s541 + $0x2c] sm:$0xf]
      %v554 = vld [vmem:[%s541 + $0x30] sm:$0xf]
      %v555 = vld [vmem:[%s541 + $0x34] sm:$0xf]
      %v556 = vld [vmem:[%s541 + $0x38] sm:$0xf]
      %v557 = vld [vmem:[%s541 + $0x3c] sm:$0xf]
      %v574 = vunpack.c.l.b16 %v542
      %v575 = vunpack.c.l.b16 %v543
      %v576 = vunpack.c.l.b16 %v544
      %v577 = vunpack.c.l.b16 %v545
      %v578 = vunpack.c.l.b16 %v546
      %v579 = vunpack.c.l.b16 %v547
      %v580 = vunpack.c.l.b16 %v548
      %v581 = vunpack.c.l.b16 %v549
      %v582 = vunpack.c.l.b16 %v550
      %v583 = vunpack.c.l.b16 %v551
      %v584 = vunpack.c.l.b16 %v552
      %v585 = vunpack.c.l.b16 %v553
      %v586 = vunpack.c.l.b16 %v554
      %v587 = vunpack.c.l.b16 %v555
      %v588 = vunpack.c.l.b16 %v556
      %v589 = vunpack.c.l.b16 %v557
      %v590 = vpack.c.b16 %v575, %v574
      %v591 = vpack.c.b16 %v577, %v576
      %v592 = vpack.c.b16 %v579, %v578
      %v593 = vpack.c.b16 %v581, %v580
      %v594 = vpack.c.b16 %v583, %v582
      %v595 = vpack.c.b16 %v585, %v584
      %v596 = vpack.c.b16 %v587, %v586
      %v597 = vpack.c.b16 %v589, %v588
      %606 = vmatpush.bf16.msra.mxu0 %v597
      %607 = vmatpush.bf16.msra.mxu0 %v596
      %608 = vmatpush.bf16.msra.mxu0 %v595
      %609 = vmatpush.bf16.msra.mxu0 %v594
      %610 = vmatpush.bf16.msra.mxu0 %v593
      %611 = vmatpush.bf16.msra.mxu0 %v592
      %612 = vmatpush.bf16.msra.mxu0 %v591
      %613 = vmatpush.bf16.msra.mxu0 %v590
      %614 = vmatmul.bf16.gmra.mxu0 %v539
      %v615 = vpop.f32.mrf.mxu0
      %v616 = vadd.f32 0.0, %v615
      %v617 = vpop.f32.mrf.mxu0
      %618 = vdwg.mxu0
      %v635 = vunpack.c.l.b16 %v506
      %v636 = vunpack.c.l.b16 %v507
      %v637 = vunpack.c.l.b16 %v508
      %v638 = vunpack.c.l.b16 %v509
      %v639 = vunpack.c.l.b16 %v510
      %v640 = vunpack.c.l.b16 %v511
      %v641 = vunpack.c.l.b16 %v512
      %v642 = vunpack.c.l.b16 %v513
      %v643 = vunpack.c.l.b16 %v514
      %v644 = vunpack.c.l.b16 %v515
      %v645 = vunpack.c.l.b16 %v516
      %v646 = vunpack.c.l.b16 %v517
      %v647 = vunpack.c.l.b16 %v518
      %v648 = vunpack.c.l.b16 %v519
      %v649 = vunpack.c.l.b16 %v520
      %v650 = vunpack.c.l.b16 %v521
      %v651 = vpack.c.b16 %v636, %v635
      %v652 = vpack.c.b16 %v638, %v637
      %v653 = vpack.c.b16 %v640, %v639
      %v654 = vpack.c.b16 %v642, %v641
      %v655 = vpack.c.b16 %v644, %v643
      %v656 = vpack.c.b16 %v646, %v645
      %v657 = vpack.c.b16 %v648, %v647
      %v658 = vpack.c.b16 %v650, %v649
      %667 = vmatpush.bf16.msra.mxu0 %v658
      %668 = vmatpush.bf16.msra.mxu0 %v657
      %669 = vmatpush.bf16.msra.mxu0 %v656
      %670 = vmatpush.bf16.msra.mxu0 %v655
      %671 = vmatpush.bf16.msra.mxu0 %v654
      %672 = vmatpush.bf16.msra.mxu0 %v653
      %673 = vmatpush.bf16.msra.mxu0 %v652
      %674 = vmatpush.bf16.msra.mxu0 %v651
      %675 = vmatmul.bf16.gmra.mxu0 %v504
      %v676 = vpop.f32.mrf.mxu0
      %v677 = vadd.f32 %v616, %v676
      %v678 = vpop.f32.mrf.mxu0
      %679 = vdwg.mxu0
      %v680 = vrot.slane %v499, 1
      %v681 = vpack.c.b16 %v523, %v523
      %v683 = vshrl.u32 %v681, 16
      %v685 = vrot.slane %v683, 6
      %v686 = vshll.u32 %v681, 16
      %v688 = vrot.slane %v686, 7
      %v689 = vor.u32 %v685, %v688
      %v692 = vsel %vm501, %v680, %v689
      %s694 = scalar_lea.vmem %s1, 128
      %v695 = vld [vmem:[%s694] sm:$0xf]
      %v696 = vld [vmem:[%s694 + $0x4] sm:$0xf]
      %v697 = vld [vmem:[%s694 + $0x8] sm:$0xf]
      %v698 = vld [vmem:[%s694 + $0xc] sm:$0xf]
      %v699 = vld [vmem:[%s694 + $0x10] sm:$0xf]
      %v700 = vld [vmem:[%s694 + $0x14] sm:$0xf]
      %v701 = vld [vmem:[%s694 + $0x18] sm:$0xf]
      %v702 = vld [vmem:[%s694 + $0x1c] sm:$0xf]
      %v703 = vld [vmem:[%s694 + $0x20] sm:$0xf]
      %v704 = vld [vmem:[%s694 + $0x24] sm:$0xf]
      %v705 = vld [vmem:[%s694 + $0x28] sm:$0xf]
      %v706 = vld [vmem:[%s694 + $0x2c] sm:$0xf]
      %v707 = vld [vmem:[%s694 + $0x30] sm:$0xf]
      %v708 = vld [vmem:[%s694 + $0x34] sm:$0xf]
      %v709 = vld [vmem:[%s694 + $0x38] sm:$0xf]
      %v710 = vld [vmem:[%s694 + $0x3c] sm:$0xf]
      %v727 = vunpack.c.l.b16 %v695
      %v728 = vunpack.c.l.b16 %v696
      %v729 = vunpack.c.l.b16 %v697
      %v730 = vunpack.c.l.b16 %v698
      %v731 = vunpack.c.l.b16 %v699
      %v732 = vunpack.c.l.b16 %v700
      %v733 = vunpack.c.l.b16 %v701
      %v734 = vunpack.c.l.b16 %v702
      %v735 = vunpack.c.l.b16 %v703
      %v736 = vunpack.c.l.b16 %v704
      %v737 = vunpack.c.l.b16 %v705
      %v738 = vunpack.c.l.b16 %v706
      %v739 = vunpack.c.l.b16 %v707
      %v740 = vunpack.c.l.b16 %v708
      %v741 = vunpack.c.l.b16 %v709
      %v742 = vunpack.c.l.b16 %v710
      %v743 = vpack.c.b16 %v728, %v727
      %v744 = vpack.c.b16 %v730, %v729
      %v745 = vpack.c.b16 %v732, %v731
      %v746 = vpack.c.b16 %v734, %v733
      %v747 = vpack.c.b16 %v736, %v735
      %v748 = vpack.c.b16 %v738, %v737
      %v749 = vpack.c.b16 %v740, %v739
      %v750 = vpack.c.b16 %v742, %v741
      %759 = vmatpush.bf16.msra.mxu0 %v750
      %760 = vmatpush.bf16.msra.mxu0 %v749
      %761 = vmatpush.bf16.msra.mxu0 %v748
      %762 = vmatpush.bf16.msra.mxu0 %v747
      %763 = vmatpush.bf16.msra.mxu0 %v746
      %764 = vmatpush.bf16.msra.mxu0 %v745
      %765 = vmatpush.bf16.msra.mxu0 %v744
      %766 = vmatpush.bf16.msra.mxu0 %v743
      %767 = vmatmul.bf16.gmra.mxu0 %v692
      %v768 = vpop.f32.mrf.mxu0
      %v769 = vadd.f32 0.0, %v768
      %v770 = vpop.f32.mrf.mxu0
      %771 = vdwg.mxu0
      %v772 = vadd.f32 %v677, %v769
      %v773 = vrot.slane %v535, 3
      %v774 = vrot.slane %v524, 1
      %v777 = vsel %vm501, %v773, %v774
      %s779 = scalar_lea.vmem %s1, 192
      %v780 = vld [vmem:[%s779] sm:$0xf]
      %v781 = vld [vmem:[%s779 + $0x4] sm:$0xf]
      %v782 = vld [vmem:[%s779 + $0x8] sm:$0xf]
      %v783 = vld [vmem:[%s779 + $0xc] sm:$0xf]
      %v784 = vld [vmem:[%s779 + $0x10] sm:$0xf]
      %v785 = vld [vmem:[%s779 + $0x14] sm:$0xf]
      %v786 = vld [vmem:[%s779 + $0x18] sm:$0xf]
      %v787 = vld [vmem:[%s779 + $0x1c] sm:$0xf]
      %v788 = vld [vmem:[%s779 + $0x20] sm:$0xf]
      %v789 = vld [vmem:[%s779 + $0x24] sm:$0xf]
      %v790 = vld [vmem:[%s779 + $0x28] sm:$0xf]
      %v791 = vld [vmem:[%s779 + $0x2c] sm:$0xf]
      %v792 = vld [vmem:[%s779 + $0x30] sm:$0xf]
      %v793 = vld [vmem:[%s779 + $0x34] sm:$0xf]
      %v794 = vld [vmem:[%s779 + $0x38] sm:$0xf]
      %v795 = vld [vmem:[%s779 + $0x3c] sm:$0xf]
      %v812 = vunpack.c.l.b16 %v780
      %v813 = vunpack.c.l.b16 %v781
      %v814 = vunpack.c.l.b16 %v782
      %v815 = vunpack.c.l.b16 %v783
      %v816 = vunpack.c.l.b16 %v784
      %v817 = vunpack.c.l.b16 %v785
      %v818 = vunpack.c.l.b16 %v786
      %v819 = vunpack.c.l.b16 %v787
      %v820 = vunpack.c.l.b16 %v788
      %v821 = vunpack.c.l.b16 %v789
      %v822 = vunpack.c.l.b16 %v790
      %v823 = vunpack.c.l.b16 %v791
      %v824 = vunpack.c.l.b16 %v792
      %v825 = vunpack.c.l.b16 %v793
      %v826 = vunpack.c.l.b16 %v794
      %v827 = vunpack.c.l.b16 %v795
      %v828 = vpack.c.b16 %v813, %v812
      %v829 = vpack.c.b16 %v815, %v814
      %v830 = vpack.c.b16 %v817, %v816
      %v831 = vpack.c.b16 %v819, %v818
      %v832 = vpack.c.b16 %v821, %v820
      %v833 = vpack.c.b16 %v823, %v822
      %v834 = vpack.c.b16 %v825, %v824
      %v835 = vpack.c.b16 %v827, %v826
      %844 = vmatpush.bf16.msra.mxu0 %v835
      %845 = vmatpush.bf16.msra.mxu0 %v834
      %846 = vmatpush.bf16.msra.mxu0 %v833
      %847 = vmatpush.bf16.msra.mxu0 %v832
      %848 = vmatpush.bf16.msra.mxu0 %v831
      %849 = vmatpush.bf16.msra.mxu0 %v830
      %850 = vmatpush.bf16.msra.mxu0 %v829
      %851 = vmatpush.bf16.msra.mxu0 %v828
      %852 = vmatmul.bf16.gmra.mxu0 %v777
      %v853 = vpop.f32.mrf.mxu0
      %v854 = vadd.f32 0.0, %v853
      %v855 = vpop.f32.mrf.mxu0
      %856 = vdwg.mxu0
      %v857 = vadd.f32 %v772, %v854
      %v858 = vld [vmem:[%s2] sm:$0x1]
      %v860 = vperm.slane %v858, 0
      %v862 = vadd.f32 %v857, %v860
      %v863 = vmax.f32 %v862, 0.0
      %v864 = vpack.c.bf16 %v863, %v863
      %v866 = vunpack.c.l.b16 %v864
      %v867 = vpack.c.b16 %v866, %v866
      %v869 = vshrl.u32 %v867, 16
      %v871 = vrot.slane %v869, 1
      %v872 = vshll.u32 %v867, 16
      %v874 = vrot.slane %v872, 2
      %v875 = vor.u32 %v871, %v874
      %vm877 = vcmask 1040384
      %vm878 = vsmask.f32 256
      %vm879 = vmand %vm877, %vm878
      %v880 = vsel %vm879, 0, %v875
      %v881 = vrot.slane %v872, 1
      %v882 = vor.u32 %v869, %v881
      %vm884 = vcmask 1041408
      %vm885 = vsmask.f32 1280
      %vm886 = vmand %vm884, %vm885
      %v887 = vsel %vm886, %v882, 0
      %v888 = vld [vmem:[%s3] sm:$0xf]
      %v889 = vld [vmem:[%s3 + $0x4] sm:$0xf]
      %v890 = vld [vmem:[%s3 + $0x8] sm:$0xf]
      %v891 = vld [vmem:[%s3 + $0xc] sm:$0xf]
      %v892 = vld [vmem:[%s3 + $0x10] sm:$0xf]
      %v893 = vld [vmem:[%s3 + $0x14] sm:$0xf]
      %v894 = vld [vmem:[%s3 + $0x18] sm:$0xf]
      %v895 = vld [vmem:[%s3 + $0x1c] sm:$0xf]
      %v896 = vld [vmem:[%s3 + $0x20] sm:$0xf]
      %v897 = vld [vmem:[%s3 + $0x24] sm:$0xf]
      %v898 = vld [vmem:[%s3 + $0x28] sm:$0xf]
      %v899 = vld [vmem:[%s3 + $0x2c] sm:$0xf]
      %v900 = vld [vmem:[%s3 + $0x30] sm:$0xf]
      %v901 = vld [vmem:[%s3 + $0x34] sm:$0xf]
      %v902 = vld [vmem:[%s3 + $0x38] sm:$0xf]
      %v903 = vld [vmem:[%s3 + $0x3c] sm:$0xf]
      %s904 = scalar_lea.vmem %s3, 64
      %v905 = vld [vmem:[%s904] sm:$0xf]
      %v906 = vld [vmem:[%s904 + $0x4] sm:$0xf]
      %v907 = vld [vmem:[%s904 + $0x8] sm:$0xf]
      %v908 = vld [vmem:[%s904 + $0xc] sm:$0xf]
      %v909 = vld [vmem:[%s904 + $0x10] sm:$0xf]
      %v910 = vld [vmem:[%s904 + $0x14] sm:$0xf]
      %v911 = vld [vmem:[%s904 + $0x18] sm:$0xf]
      %v912 = vld [vmem:[%s904 + $0x1c] sm:$0xf]
      %v913 = vld [vmem:[%s904 + $0x20] sm:$0xf]
      %v914 = vld [vmem:[%s904 + $0x24] sm:$0xf]
      %v915 = vld [vmem:[%s904 + $0x28] sm:$0xf]
      %v916 = vld [vmem:[%s904 + $0x2c] sm:$0xf]
      %v917 = vld [vmem:[%s904 + $0x30] sm:$0xf]
      %v918 = vld [vmem:[%s904 + $0x34] sm:$0xf]
      %v919 = vld [vmem:[%s904 + $0x38] sm:$0xf]
      %v920 = vld [vmem:[%s904 + $0x3c] sm:$0xf]
      %v937 = vunpack.c.l.b16 %v905
      %v938 = vunpack.c.l.b16 %v906
      %v939 = vunpack.c.l.b16 %v907
      %v940 = vunpack.c.l.b16 %v908
      %v941 = vunpack.c.l.b16 %v909
      %v942 = vunpack.c.l.b16 %v910
      %v943 = vunpack.c.l.b16 %v911
      %v944 = vunpack.c.l.b16 %v912
      %v945 = vunpack.c.l.b16 %v913
      %v946 = vunpack.c.l.b16 %v914
      %v947 = vunpack.c.l.b16 %v915
      %v948 = vunpack.c.l.b16 %v916
      %v949 = vunpack.c.l.b16 %v917
      %v950 = vunpack.c.l.b16 %v918
      %v951 = vunpack.c.l.b16 %v919
      %v952 = vunpack.c.l.b16 %v920
      %v953 = vpack.c.b16 %v938, %v937
      %v954 = vpack.c.b16 %v940, %v939
      %v955 = vpack.c.b16 %v942, %v941
      %v956 = vpack.c.b16 %v944, %v943
      %v957 = vpack.c.b16 %v946, %v945
      %v958 = vpack.c.b16 %v948, %v947
      %v959 = vpack.c.b16 %v950, %v949
      %v960 = vpack.c.b16 %v952, %v951
      %969 = vmatpush.bf16.msra.mxu0 %v960
      %970 = vmatpush.bf16.msra.mxu0 %v959
      %971 = vmatpush.bf16.msra.mxu0 %v958
      %972 = vmatpush.bf16.msra.mxu0 %v957
      %973 = vmatpush.bf16.msra.mxu0 %v956
      %974 = vmatpush.bf16.msra.mxu0 %v955
      %975 = vmatpush.bf16.msra.mxu0 %v954
      %976 = vmatpush.bf16.msra.mxu0 %v953
      %977 = vmatmul.bf16.gmra.mxu0 %v864
      %v978 = vpop.f32.mrf.mxu0
      %v979 = vadd.f32 0.0, %v978
      %v980 = vpop.f32.mrf.mxu0
      %981 = vdwg.mxu0
      %v998 = vunpack.c.l.b16 %v888
      %v999 = vunpack.c.l.b16 %v889
      %v1000 = vunpack.c.l.b16 %v890
      %v1001 = vunpack.c.l.b16 %v891
      %v1002 = vunpack.c.l.b16 %v892
      %v1003 = vunpack.c.l.b16 %v893
      %v1004 = vunpack.c.l.b16 %v894
      %v1005 = vunpack.c.l.b16 %v895
      %v1006 = vunpack.c.l.b16 %v896
      %v1007 = vunpack.c.l.b16 %v897
      %v1008 = vunpack.c.l.b16 %v898
      %v1009 = vunpack.c.l.b16 %v899
      %v1010 = vunpack.c.l.b16 %v900
      %v1011 = vunpack.c.l.b16 %v901
      %v1012 = vunpack.c.l.b16 %v902
      %v1013 = vunpack.c.l.b16 %v903
      %v1014 = vpack.c.b16 %v999, %v998
      %v1015 = vpack.c.b16 %v1001, %v1000
      %v1016 = vpack.c.b16 %v1003, %v1002
      %v1017 = vpack.c.b16 %v1005, %v1004
      %v1018 = vpack.c.b16 %v1007, %v1006
      %v1019 = vpack.c.b16 %v1009, %v1008
      %v1020 = vpack.c.b16 %v1011, %v1010
      %v1021 = vpack.c.b16 %v1013, %v1012
      %1030 = vmatpush.bf16.msra.mxu0 %v1021
      %1031 = vmatpush.bf16.msra.mxu0 %v1020
      %1032 = vmatpush.bf16.msra.mxu0 %v1019
      %1033 = vmatpush.bf16.msra.mxu0 %v1018
      %1034 = vmatpush.bf16.msra.mxu0 %v1017
      %1035 = vmatpush.bf16.msra.mxu0 %v1016
      %1036 = vmatpush.bf16.msra.mxu0 %v1015
      %1037 = vmatpush.bf16.msra.mxu0 %v1014
      %1038 = vmatmul.bf16.gmra.mxu0 %v880
      %v1039 = vpop.f32.mrf.mxu0
      %v1040 = vadd.f32 %v979, %v1039
      %v1041 = vpop.f32.mrf.mxu0
      %1042 = vdwg.mxu0
      %s1043 = scalar_lea.vmem %s3, 128
      %v1044 = vld [vmem:[%s1043] sm:$0xf]
      %v1045 = vld [vmem:[%s1043 + $0x4] sm:$0xf]
      %v1046 = vld [vmem:[%s1043 + $0x8] sm:$0xf]
      %v1047 = vld [vmem:[%s1043 + $0xc] sm:$0xf]
      %v1048 = vld [vmem:[%s1043 + $0x10] sm:$0xf]
      %v1049 = vld [vmem:[%s1043 + $0x14] sm:$0xf]
      %v1050 = vld [vmem:[%s1043 + $0x18] sm:$0xf]
      %v1051 = vld [vmem:[%s1043 + $0x1c] sm:$0xf]
      %v1052 = vld [vmem:[%s1043 + $0x20] sm:$0xf]
      %v1053 = vld [vmem:[%s1043 + $0x24] sm:$0xf]
      %v1054 = vld [vmem:[%s1043 + $0x28] sm:$0xf]
      %v1055 = vld [vmem:[%s1043 + $0x2c] sm:$0xf]
      %v1056 = vld [vmem:[%s1043 + $0x30] sm:$0xf]
      %v1057 = vld [vmem:[%s1043 + $0x34] sm:$0xf]
      %v1058 = vld [vmem:[%s1043 + $0x38] sm:$0xf]
      %v1059 = vld [vmem:[%s1043 + $0x3c] sm:$0xf]
      %v1060 = vrot.slane %v867, 2
      %v1078 = vunpack.c.l.b16 %v1044
      %v1079 = vunpack.c.l.b16 %v1045
      %v1080 = vunpack.c.l.b16 %v1046
      %v1081 = vunpack.c.l.b16 %v1047
      %v1082 = vunpack.c.l.b16 %v1048
      %v1083 = vunpack.c.l.b16 %v1049
      %v1084 = vunpack.c.l.b16 %v1050
      %v1085 = vunpack.c.l.b16 %v1051
      %v1086 = vunpack.c.l.b16 %v1052
      %v1087 = vunpack.c.l.b16 %v1053
      %v1088 = vunpack.c.l.b16 %v1054
      %v1089 = vunpack.c.l.b16 %v1055
      %v1090 = vunpack.c.l.b16 %v1056
      %v1091 = vunpack.c.l.b16 %v1057
      %v1092 = vunpack.c.l.b16 %v1058
      %v1093 = vunpack.c.l.b16 %v1059
      %v1094 = vpack.c.b16 %v1079, %v1078
      %v1095 = vpack.c.b16 %v1081, %v1080
      %v1096 = vpack.c.b16 %v1083, %v1082
      %v1097 = vpack.c.b16 %v1085, %v1084
      %v1098 = vpack.c.b16 %v1087, %v1086
      %v1099 = vpack.c.b16 %v1089, %v1088
      %v1100 = vpack.c.b16 %v1091, %v1090
      %v1101 = vpack.c.b16 %v1093, %v1092
      %1110 = vmatpush.bf16.msra.mxu0 %v1101
      %1111 = vmatpush.bf16.msra.mxu0 %v1100
      %1112 = vmatpush.bf16.msra.mxu0 %v1099
      %1113 = vmatpush.bf16.msra.mxu0 %v1098
      %1114 = vmatpush.bf16.msra.mxu0 %v1097
      %1115 = vmatpush.bf16.msra.mxu0 %v1096
      %1116 = vmatpush.bf16.msra.mxu0 %v1095
      %1117 = vmatpush.bf16.msra.mxu0 %v1094
      %1118 = vmatmul.bf16.gmra.mxu0 %v1060
      %v1119 = vpop.f32.mrf.mxu0
      %v1120 = vadd.f32 0.0, %v1119
      %v1121 = vpop.f32.mrf.mxu0
      %1122 = vdwg.mxu0
      %v1123 = vadd.f32 %v1040, %v1120
      %s1124 = scalar_lea.vmem %s3, 192
      %v1125 = vld [vmem:[%s1124] sm:$0xf]
      %v1126 = vld [vmem:[%s1124 + $0x4] sm:$0xf]
      %v1127 = vld [vmem:[%s1124 + $0x8] sm:$0xf]
      %v1128 = vld [vmem:[%s1124 + $0xc] sm:$0xf]
      %v1129 = vld [vmem:[%s1124 + $0x10] sm:$0xf]
      %v1130 = vld [vmem:[%s1124 + $0x14] sm:$0xf]
      %v1131 = vld [vmem:[%s1124 + $0x18] sm:$0xf]
      %v1132 = vld [vmem:[%s1124 + $0x1c] sm:$0xf]
      %v1133 = vld [vmem:[%s1124 + $0x20] sm:$0xf]
      %v1134 = vld [vmem:[%s1124 + $0x24] sm:$0xf]
      %v1135 = vld [vmem:[%s1124 + $0x28] sm:$0xf]
      %v1136 = vld [vmem:[%s1124 + $0x2c] sm:$0xf]
      %v1137 = vld [vmem:[%s1124 + $0x30] sm:$0xf]
      %v1138 = vld [vmem:[%s1124 + $0x34] sm:$0xf]
      %v1139 = vld [vmem:[%s1124 + $0x38] sm:$0xf]
      %v1140 = vld [vmem:[%s1124 + $0x3c] sm:$0xf]
      %v1157 = vunpack.c.l.b16 %v1125
      %v1158 = vunpack.c.l.b16 %v1126
      %v1159 = vunpack.c.l.b16 %v1127
      %v1160 = vunpack.c.l.b16 %v1128
      %v1161 = vunpack.c.l.b16 %v1129
      %v1162 = vunpack.c.l.b16 %v1130
      %v1163 = vunpack.c.l.b16 %v1131
      %v1164 = vunpack.c.l.b16 %v1132
      %v1165 = vunpack.c.l.b16 %v1133
      %v1166 = vunpack.c.l.b16 %v1134
      %v1167 = vunpack.c.l.b16 %v1135
      %v1168 = vunpack.c.l.b16 %v1136
      %v1169 = vunpack.c.l.b16 %v1137
      %v1170 = vunpack.c.l.b16 %v1138
      %v1171 = vunpack.c.l.b16 %v1139
      %v1172 = vunpack.c.l.b16 %v1140
      %v1173 = vpack.c.b16 %v1158, %v1157
      %v1174 = vpack.c.b16 %v1160, %v1159
      %v1175 = vpack.c.b16 %v1162, %v1161
      %v1176 = vpack.c.b16 %v1164, %v1163
      %v1177 = vpack.c.b16 %v1166, %v1165
      %v1178 = vpack.c.b16 %v1168, %v1167
      %v1179 = vpack.c.b16 %v1170, %v1169
      %v1180 = vpack.c.b16 %v1172, %v1171
      %1189 = vmatpush.bf16.msra.mxu0 %v1180
      %1190 = vmatpush.bf16.msra.mxu0 %v1179
      %1191 = vmatpush.bf16.msra.mxu0 %v1178
      %1192 = vmatpush.bf16.msra.mxu0 %v1177
      %1193 = vmatpush.bf16.msra.mxu0 %v1176
      %1194 = vmatpush.bf16.msra.mxu0 %v1175
      %1195 = vmatpush.bf16.msra.mxu0 %v1174
      %1196 = vmatpush.bf16.msra.mxu0 %v1173
      %1197 = vmatmul.bf16.gmra.mxu0 %v887
      %v1198 = vpop.f32.mrf.mxu0
      %v1199 = vadd.f32 0.0, %v1198
      %v1200 = vpop.f32.mrf.mxu0
      %1201 = vdwg.mxu0
      %v1202 = vadd.f32 %v1123, %v1199
      %v1203 = vld [vmem:[%s4] sm:$0x1]
      %v1205 = vperm.slane %v1203, 0
      %v1207 = vadd.f32 %v1202, %v1205
      %v1208 = vmax.f32 %v1207, 0.0
      %v1209 = vpack.c.bf16 %v1208, %v1208
      %v1211 = vunpack.c.l.b16 %v1209
      %v1212 = vpack.c.b16 %v1211, %v1211
      %v1214 = vshrl.u32 %v1212, 16
      %v1216 = vrot.slane %v1214, 7
      %v1217 = vshll.u32 %v1212, 16
      %v1219 = vor.u32 %v1216, %v1217
      %v1221 = vsel %vm879, 0, %v1219
      %v1222 = vrot.slane %v1217, 1
      %v1223 = vor.u32 %v1214, %v1222
      %v1225 = vsel %vm886, %v1223, 0
      %v1226 = vld [vmem:[%s5] sm:$0xf]
      %v1227 = vld [vmem:[%s5 + $0x4] sm:$0xf]
      %v1228 = vld [vmem:[%s5 + $0x8] sm:$0xf]
      %v1229 = vld [vmem:[%s5 + $0xc] sm:$0xf]
      %v1230 = vld [vmem:[%s5 + $0x10] sm:$0xf]
      %v1231 = vld [vmem:[%s5 + $0x14] sm:$0xf]
      %v1232 = vld [vmem:[%s5 + $0x18] sm:$0xf]
      %v1233 = vld [vmem:[%s5 + $0x1c] sm:$0xf]
      %v1234 = vld [vmem:[%s5 + $0x20] sm:$0xf]
      %v1235 = vld [vmem:[%s5 + $0x24] sm:$0xf]
      %v1236 = vld [vmem:[%s5 + $0x28] sm:$0xf]
      %v1237 = vld [vmem:[%s5 + $0x2c] sm:$0xf]
      %v1238 = vld [vmem:[%s5 + $0x30] sm:$0xf]
      %v1239 = vld [vmem:[%s5 + $0x34] sm:$0xf]
      %v1240 = vld [vmem:[%s5 + $0x38] sm:$0xf]
      %v1241 = vld [vmem:[%s5 + $0x3c] sm:$0xf]
      %s1242 = scalar_lea.vmem %s5, 64
      %v1243 = vld [vmem:[%s1242] sm:$0xf]
      %v1244 = vld [vmem:[%s1242 + $0x4] sm:$0xf]
      %v1245 = vld [vmem:[%s1242 + $0x8] sm:$0xf]
      %v1246 = vld [vmem:[%s1242 + $0xc] sm:$0xf]
      %v1247 = vld [vmem:[%s1242 + $0x10] sm:$0xf]
      %v1248 = vld [vmem:[%s1242 + $0x14] sm:$0xf]
      %v1249 = vld [vmem:[%s1242 + $0x18] sm:$0xf]
      %v1250 = vld [vmem:[%s1242 + $0x1c] sm:$0xf]
      %v1251 = vld [vmem:[%s1242 + $0x20] sm:$0xf]
      %v1252 = vld [vmem:[%s1242 + $0x24] sm:$0xf]
      %v1253 = vld [vmem:[%s1242 + $0x28] sm:$0xf]
      %v1254 = vld [vmem:[%s1242 + $0x2c] sm:$0xf]
      %v1255 = vld [vmem:[%s1242 + $0x30] sm:$0xf]
      %v1256 = vld [vmem:[%s1242 + $0x34] sm:$0xf]
      %v1257 = vld [vmem:[%s1242 + $0x38] sm:$0xf]
      %v1258 = vld [vmem:[%s1242 + $0x3c] sm:$0xf]
      %v1275 = vunpack.c.l.b16 %v1243
      %v1276 = vunpack.c.l.b16 %v1244
      %v1277 = vunpack.c.l.b16 %v1245
      %v1278 = vunpack.c.l.b16 %v1246
      %v1279 = vunpack.c.l.b16 %v1247
      %v1280 = vunpack.c.l.b16 %v1248
      %v1281 = vunpack.c.l.b16 %v1249
      %v1282 = vunpack.c.l.b16 %v1250
      %v1283 = vunpack.c.l.b16 %v1251
      %v1284 = vunpack.c.l.b16 %v1252
      %v1285 = vunpack.c.l.b16 %v1253
      %v1286 = vunpack.c.l.b16 %v1254
      %v1287 = vunpack.c.l.b16 %v1255
      %v1288 = vunpack.c.l.b16 %v1256
      %v1289 = vunpack.c.l.b16 %v1257
      %v1290 = vunpack.c.l.b16 %v1258
      %v1291 = vpack.c.b16 %v1276, %v1275
      %v1292 = vpack.c.b16 %v1278, %v1277
      %v1293 = vpack.c.b16 %v1280, %v1279
      %v1294 = vpack.c.b16 %v1282, %v1281
      %v1295 = vpack.c.b16 %v1284, %v1283
      %v1296 = vpack.c.b16 %v1286, %v1285
      %v1297 = vpack.c.b16 %v1288, %v1287
      %v1298 = vpack.c.b16 %v1290, %v1289
      %1307 = vmatpush.bf16.msra.mxu0 %v1298
      %1308 = vmatpush.bf16.msra.mxu0 %v1297
      %1309 = vmatpush.bf16.msra.mxu0 %v1296
      %1310 = vmatpush.bf16.msra.mxu0 %v1295
      %1311 = vmatpush.bf16.msra.mxu0 %v1294
      %1312 = vmatpush.bf16.msra.mxu0 %v1293
      %1313 = vmatpush.bf16.msra.mxu0 %v1292
      %1314 = vmatpush.bf16.msra.mxu0 %v1291
      %1315 = vmatmul.bf16.gmra.mxu0 %v1209
      %v1316 = vpop.f32.mrf.mxu0
      %v1317 = vadd.f32 0.0, %v1316
      %v1318 = vpop.f32.mrf.mxu0
      %1319 = vdwg.mxu0
      %v1336 = vunpack.c.l.b16 %v1226
      %v1337 = vunpack.c.l.b16 %v1227
      %v1338 = vunpack.c.l.b16 %v1228
      %v1339 = vunpack.c.l.b16 %v1229
      %v1340 = vunpack.c.l.b16 %v1230
      %v1341 = vunpack.c.l.b16 %v1231
      %v1342 = vunpack.c.l.b16 %v1232
      %v1343 = vunpack.c.l.b16 %v1233
      %v1344 = vunpack.c.l.b16 %v1234
      %v1345 = vunpack.c.l.b16 %v1235
      %v1346 = vunpack.c.l.b16 %v1236
      %v1347 = vunpack.c.l.b16 %v1237
      %v1348 = vunpack.c.l.b16 %v1238
      %v1349 = vunpack.c.l.b16 %v1239
      %v1350 = vunpack.c.l.b16 %v1240
      %v1351 = vunpack.c.l.b16 %v1241
      %v1352 = vpack.c.b16 %v1337, %v1336
      %v1353 = vpack.c.b16 %v1339, %v1338
      %v1354 = vpack.c.b16 %v1341, %v1340
      %v1355 = vpack.c.b16 %v1343, %v1342
      %v1356 = vpack.c.b16 %v1345, %v1344
      %v1357 = vpack.c.b16 %v1347, %v1346
      %v1358 = vpack.c.b16 %v1349, %v1348
      %v1359 = vpack.c.b16 %v1351, %v1350
      %1368 = vmatpush.bf16.msra.mxu0 %v1359
      %1369 = vmatpush.bf16.msra.mxu0 %v1358
      %1370 = vmatpush.bf16.msra.mxu0 %v1357
      %1371 = vmatpush.bf16.msra.mxu0 %v1356
      %1372 = vmatpush.bf16.msra.mxu0 %v1355
      %1373 = vmatpush.bf16.msra.mxu0 %v1354
      %1374 = vmatpush.bf16.msra.mxu0 %v1353
      %1375 = vmatpush.bf16.msra.mxu0 %v1352
      %1376 = vmatmul.bf16.gmra.mxu0 %v1221
      %v1377 = vpop.f32.mrf.mxu0
      %v1378 = vadd.f32 %v1317, %v1377
      %v1379 = vpop.f32.mrf.mxu0
      %1380 = vdwg.mxu0
      %s1381 = scalar_lea.vmem %s5, 128
      %v1382 = vld [vmem:[%s1381] sm:$0xf]
      %v1383 = vld [vmem:[%s1381 + $0x4] sm:$0xf]
      %v1384 = vld [vmem:[%s1381 + $0x8] sm:$0xf]
      %v1385 = vld [vmem:[%s1381 + $0xc] sm:$0xf]
      %v1386 = vld [vmem:[%s1381 + $0x10] sm:$0xf]
      %v1387 = vld [vmem:[%s1381 + $0x14] sm:$0xf]
      %v1388 = vld [vmem:[%s1381 + $0x18] sm:$0xf]
      %v1389 = vld [vmem:[%s1381 + $0x1c] sm:$0xf]
      %v1390 = vld [vmem:[%s1381 + $0x20] sm:$0xf]
      %v1391 = vld [vmem:[%s1381 + $0x24] sm:$0xf]
      %v1392 = vld [vmem:[%s1381 + $0x28] sm:$0xf]
      %v1393 = vld [vmem:[%s1381 + $0x2c] sm:$0xf]
      %v1394 = vld [vmem:[%s1381 + $0x30] sm:$0xf]
      %v1395 = vld [vmem:[%s1381 + $0x34] sm:$0xf]
      %v1396 = vld [vmem:[%s1381 + $0x38] sm:$0xf]
      %v1397 = vld [vmem:[%s1381 + $0x3c] sm:$0xf]
      %v1414 = vunpack.c.l.b16 %v1382
      %v1415 = vunpack.c.l.b16 %v1383
      %v1416 = vunpack.c.l.b16 %v1384
      %v1417 = vunpack.c.l.b16 %v1385
      %v1418 = vunpack.c.l.b16 %v1386
      %v1419 = vunpack.c.l.b16 %v1387
      %v1420 = vunpack.c.l.b16 %v1388
      %v1421 = vunpack.c.l.b16 %v1389
      %v1422 = vunpack.c.l.b16 %v1390
      %v1423 = vunpack.c.l.b16 %v1391
      %v1424 = vunpack.c.l.b16 %v1392
      %v1425 = vunpack.c.l.b16 %v1393
      %v1426 = vunpack.c.l.b16 %v1394
      %v1427 = vunpack.c.l.b16 %v1395
      %v1428 = vunpack.c.l.b16 %v1396
      %v1429 = vunpack.c.l.b16 %v1397
      %v1430 = vpack.c.b16 %v1415, %v1414
      %v1431 = vpack.c.b16 %v1417, %v1416
      %v1432 = vpack.c.b16 %v1419, %v1418
      %v1433 = vpack.c.b16 %v1421, %v1420
      %v1434 = vpack.c.b16 %v1423, %v1422
      %v1435 = vpack.c.b16 %v1425, %v1424
      %v1436 = vpack.c.b16 %v1427, %v1426
      %v1437 = vpack.c.b16 %v1429, %v1428
      %1446 = vmatpush.bf16.msra.mxu0 %v1437
      %1447 = vmatpush.bf16.msra.mxu0 %v1436
      %1448 = vmatpush.bf16.msra.mxu0 %v1435
      %1449 = vmatpush.bf16.msra.mxu0 %v1434
      %1450 = vmatpush.bf16.msra.mxu0 %v1433
      %1451 = vmatpush.bf16.msra.mxu0 %v1432
      %1452 = vmatpush.bf16.msra.mxu0 %v1431
      %1453 = vmatpush.bf16.msra.mxu0 %v1430
      %1454 = vmatmul.bf16.gmra.mxu0 %v1225
      %v1455 = vpop.f32.mrf.mxu0
      %v1456 = vadd.f32 0.0, %v1455
      %v1457 = vpop.f32.mrf.mxu0
      %1458 = vdwg.mxu0
      %v1459 = vadd.f32 %v1378, %v1456
      %v1460 = vld [vmem:[%s6] sm:$0x1]
      %v1462 = vperm.slane %v1460, 0
      %v1464 = vadd.f32 %v1459, %v1462
      %v1465 = vmax.f32 %v1464, 0.0
      %v1466 = vpack.c.bf16 %v1465, %v1465
      %v1468 = vunpack.c.l.b16 %v1466
      %v1469 = vpack.c.b16 %v1468, %v1468
      %v1471 = vshrl.u32 %v1469, 16
      %v1473 = vrot.slane %v1471, 7
      %v1474 = vshll.u32 %v1469, 16
      %v1476 = vor.u32 %v1473, %v1474
      %v1478 = vsel %vm879, 0, %v1476
      %v1479 = vrot.slane %v1474, 1
      %v1480 = vor.u32 %v1471, %v1479
      %v1482 = vsel %vm886, %v1480, 0
      %v1483 = vld [vmem:[%s7] sm:$0xf]
      %v1484 = vld [vmem:[%s7 + $0x4] sm:$0xf]
      %v1485 = vld [vmem:[%s7 + $0x8] sm:$0xf]
      %v1486 = vld [vmem:[%s7 + $0xc] sm:$0xf]
      %v1487 = vld [vmem:[%s7 + $0x10] sm:$0xf]
      %v1488 = vld [vmem:[%s7 + $0x14] sm:$0xf]
      %v1489 = vld [vmem:[%s7 + $0x18] sm:$0xf]
      %v1490 = vld [vmem:[%s7 + $0x1c] sm:$0xf]
      %v1491 = vld [vmem:[%s7 + $0x20] sm:$0xf]
      %v1492 = vld [vmem:[%s7 + $0x24] sm:$0xf]
      %v1493 = vld [vmem:[%s7 + $0x28] sm:$0xf]
      %v1494 = vld [vmem:[%s7 + $0x2c] sm:$0xf]
      %v1495 = vld [vmem:[%s7 + $0x30] sm:$0xf]
      %v1496 = vld [vmem:[%s7 + $0x34] sm:$0xf]
      %v1497 = vld [vmem:[%s7 + $0x38] sm:$0xf]
      %v1498 = vld [vmem:[%s7 + $0x3c] sm:$0xf]
      %s1499 = scalar_lea.vmem %s7, 64
      %v1500 = vld [vmem:[%s1499] sm:$0xf]
      %v1501 = vld [vmem:[%s1499 + $0x4] sm:$0xf]
      %v1502 = vld [vmem:[%s1499 + $0x8] sm:$0xf]
      %v1503 = vld [vmem:[%s1499 + $0xc] sm:$0xf]
      %v1504 = vld [vmem:[%s1499 + $0x10] sm:$0xf]
      %v1505 = vld [vmem:[%s1499 + $0x14] sm:$0xf]
      %v1506 = vld [vmem:[%s1499 + $0x18] sm:$0xf]
      %v1507 = vld [vmem:[%s1499 + $0x1c] sm:$0xf]
      %v1508 = vld [vmem:[%s1499 + $0x20] sm:$0xf]
      %v1509 = vld [vmem:[%s1499 + $0x24] sm:$0xf]
      %v1510 = vld [vmem:[%s1499 + $0x28] sm:$0xf]
      %v1511 = vld [vmem:[%s1499 + $0x2c] sm:$0xf]
      %v1512 = vld [vmem:[%s1499 + $0x30] sm:$0xf]
      %v1513 = vld [vmem:[%s1499 + $0x34] sm:$0xf]
      %v1514 = vld [vmem:[%s1499 + $0x38] sm:$0xf]
      %v1515 = vld [vmem:[%s1499 + $0x3c] sm:$0xf]
      %v1532 = vunpack.c.l.b16 %v1500
      %v1533 = vunpack.c.l.b16 %v1501
      %v1534 = vunpack.c.l.b16 %v1502
      %v1535 = vunpack.c.l.b16 %v1503
      %v1536 = vunpack.c.l.b16 %v1504
      %v1537 = vunpack.c.l.b16 %v1505
      %v1538 = vunpack.c.l.b16 %v1506
      %v1539 = vunpack.c.l.b16 %v1507
      %v1540 = vunpack.c.l.b16 %v1508
      %v1541 = vunpack.c.l.b16 %v1509
      %v1542 = vunpack.c.l.b16 %v1510
      %v1543 = vunpack.c.l.b16 %v1511
      %v1544 = vunpack.c.l.b16 %v1512
      %v1545 = vunpack.c.l.b16 %v1513
      %v1546 = vunpack.c.l.b16 %v1514
      %v1547 = vunpack.c.l.b16 %v1515
      %v1548 = vpack.c.b16 %v1533, %v1532
      %v1549 = vpack.c.b16 %v1535, %v1534
      %v1550 = vpack.c.b16 %v1537, %v1536
      %v1551 = vpack.c.b16 %v1539, %v1538
      %v1552 = vpack.c.b16 %v1541, %v1540
      %v1553 = vpack.c.b16 %v1543, %v1542
      %v1554 = vpack.c.b16 %v1545, %v1544
      %v1555 = vpack.c.b16 %v1547, %v1546
      %1564 = vmatpush.bf16.msra.mxu0 %v1555
      %1565 = vmatpush.bf16.msra.mxu0 %v1554
      %1566 = vmatpush.bf16.msra.mxu0 %v1553
      %1567 = vmatpush.bf16.msra.mxu0 %v1552
      %1568 = vmatpush.bf16.msra.mxu0 %v1551
      %1569 = vmatpush.bf16.msra.mxu0 %v1550
      %1570 = vmatpush.bf16.msra.mxu0 %v1549
      %1571 = vmatpush.bf16.msra.mxu0 %v1548
      %1572 = vmatmul.bf16.gmra.mxu0 %v1466
      %v1573 = vpop.f32.mrf.mxu0
      %v1574 = vadd.f32 0.0, %v1573
      %v1575 = vpop.f32.mrf.mxu0
      %1576 = vdwg.mxu0
      %v1593 = vunpack.c.l.b16 %v1483
      %v1594 = vunpack.c.l.b16 %v1484
      %v1595 = vunpack.c.l.b16 %v1485
      %v1596 = vunpack.c.l.b16 %v1486
      %v1597 = vunpack.c.l.b16 %v1487
      %v1598 = vunpack.c.l.b16 %v1488
      %v1599 = vunpack.c.l.b16 %v1489
      %v1600 = vunpack.c.l.b16 %v1490
      %v1601 = vunpack.c.l.b16 %v1491
      %v1602 = vunpack.c.l.b16 %v1492
      %v1603 = vunpack.c.l.b16 %v1493
      %v1604 = vunpack.c.l.b16 %v1494
      %v1605 = vunpack.c.l.b16 %v1495
      %v1606 = vunpack.c.l.b16 %v1496
      %v1607 = vunpack.c.l.b16 %v1497
      %v1608 = vunpack.c.l.b16 %v1498
      %v1609 = vpack.c.b16 %v1594, %v1593
      %v1610 = vpack.c.b16 %v1596, %v1595
      %v1611 = vpack.c.b16 %v1598, %v1597
      %v1612 = vpack.c.b16 %v1600, %v1599
      %v1613 = vpack.c.b16 %v1602, %v1601
      %v1614 = vpack.c.b16 %v1604, %v1603
      %v1615 = vpack.c.b16 %v1606, %v1605
      %v1616 = vpack.c.b16 %v1608, %v1607
      %1625 = vmatpush.bf16.msra.mxu0 %v1616
      %1626 = vmatpush.bf16.msra.mxu0 %v1615
      %1627 = vmatpush.bf16.msra.mxu0 %v1614
      %1628 = vmatpush.bf16.msra.mxu0 %v1613
      %1629 = vmatpush.bf16.msra.mxu0 %v1612
      %1630 = vmatpush.bf16.msra.mxu0 %v1611
      %1631 = vmatpush.bf16.msra.mxu0 %v1610
      %1632 = vmatpush.bf16.msra.mxu0 %v1609
      %1633 = vmatmul.bf16.gmra.mxu0 %v1478
      %v1634 = vpop.f32.mrf.mxu0
      %v1635 = vadd.f32 %v1574, %v1634
      %v1636 = vpop.f32.mrf.mxu0
      %1637 = vdwg.mxu0
      %s1638 = scalar_lea.vmem %s7, 128
      %v1639 = vld [vmem:[%s1638] sm:$0xf]
      %v1640 = vld [vmem:[%s1638 + $0x4] sm:$0xf]
      %v1641 = vld [vmem:[%s1638 + $0x8] sm:$0xf]
      %v1642 = vld [vmem:[%s1638 + $0xc] sm:$0xf]
      %v1643 = vld [vmem:[%s1638 + $0x10] sm:$0xf]
      %v1644 = vld [vmem:[%s1638 + $0x14] sm:$0xf]
      %v1645 = vld [vmem:[%s1638 + $0x18] sm:$0xf]
      %v1646 = vld [vmem:[%s1638 + $0x1c] sm:$0xf]
      %v1647 = vld [vmem:[%s1638 + $0x20] sm:$0xf]
      %v1648 = vld [vmem:[%s1638 + $0x24] sm:$0xf]
      %v1649 = vld [vmem:[%s1638 + $0x28] sm:$0xf]
      %v1650 = vld [vmem:[%s1638 + $0x2c] sm:$0xf]
      %v1651 = vld [vmem:[%s1638 + $0x30] sm:$0xf]
      %v1652 = vld [vmem:[%s1638 + $0x34] sm:$0xf]
      %v1653 = vld [vmem:[%s1638 + $0x38] sm:$0xf]
      %v1654 = vld [vmem:[%s1638 + $0x3c] sm:$0xf]
      %v1671 = vunpack.c.l.b16 %v1639
      %v1672 = vunpack.c.l.b16 %v1640
      %v1673 = vunpack.c.l.b16 %v1641
      %v1674 = vunpack.c.l.b16 %v1642
      %v1675 = vunpack.c.l.b16 %v1643
      %v1676 = vunpack.c.l.b16 %v1644
      %v1677 = vunpack.c.l.b16 %v1645
      %v1678 = vunpack.c.l.b16 %v1646
      %v1679 = vunpack.c.l.b16 %v1647
      %v1680 = vunpack.c.l.b16 %v1648
      %v1681 = vunpack.c.l.b16 %v1649
      %v1682 = vunpack.c.l.b16 %v1650
      %v1683 = vunpack.c.l.b16 %v1651
      %v1684 = vunpack.c.l.b16 %v1652
      %v1685 = vunpack.c.l.b16 %v1653
      %v1686 = vunpack.c.l.b16 %v1654
      %v1687 = vpack.c.b16 %v1672, %v1671
      %v1688 = vpack.c.b16 %v1674, %v1673
      %v1689 = vpack.c.b16 %v1676, %v1675
      %v1690 = vpack.c.b16 %v1678, %v1677
      %v1691 = vpack.c.b16 %v1680, %v1679
      %v1692 = vpack.c.b16 %v1682, %v1681
      %v1693 = vpack.c.b16 %v1684, %v1683
      %v1694 = vpack.c.b16 %v1686, %v1685
      %1703 = vmatpush.bf16.msra.mxu0 %v1694
      %1704 = vmatpush.bf16.msra.mxu0 %v1693
      %1705 = vmatpush.bf16.msra.mxu0 %v1692
      %1706 = vmatpush.bf16.msra.mxu0 %v1691
      %1707 = vmatpush.bf16.msra.mxu0 %v1690
      %1708 = vmatpush.bf16.msra.mxu0 %v1689
      %1709 = vmatpush.bf16.msra.mxu0 %v1688
      %1710 = vmatpush.bf16.msra.mxu0 %v1687
      %1711 = vmatmul.bf16.gmra.mxu0 %v1482
      %v1712 = vpop.f32.mrf.mxu0
      %v1713 = vadd.f32 0.0, %v1712
      %v1714 = vpop.f32.mrf.mxu0
      %1715 = vdwg.mxu0
      %v1716 = vadd.f32 %v1635, %v1713
      %v1717 = vld [vmem:[%s8] sm:$0x1]
      %v1719 = vperm.slane %v1717, 0
      %v1721 = vadd.f32 %v1716, %v1719
      %v1722 = vmax.f32 %v1721, 0.0
      %v1723 = vpack.c.bf16 %v1722, %v1722
      %v1724 = vld [vmem:[%s9] sm:$0xf]
      %vm1725 = vcmask 64512
      %v1727 = vsel %vm1725, %v1723, 0
      %vm1729 = vcmask 1043456
      %v1731 = vsel %vm1729, %v1724, 0
      %1733 = vmatpush.bf16.msra.mxu0 0
      %1734 = vmatpush.bf16.msra.mxu0 0
      %1735 = vmatpush.bf16.msra.mxu0 0
      %1736 = vmatpush.bf16.msra.mxu0 0
      %1737 = vmatpush.bf16.msra.mxu0 0
      %1738 = vmatpush.bf16.msra.mxu0 0
      %1739 = vmatpush.bf16.msra.mxu0 0
      %1740 = vmatpush.bf16.msra.mxu0 %v1731
      %1741 = vmatmul.bf16.gmra.mxu0 %v1727
      %v1742 = vpop.f32.mrf.mxu0
      %v1743 = vadd.f32 0.0, %v1742
      %v1744 = vpop.f32.mrf.mxu0
      %1745 = vdwg.mxu0
      %v1747 = vunpack.c.l.b16 %v1723
      %v1748 = vpack.c.b16 %v1747, %v1747
      %1749 = vrot.lane.b32.xlu0 %v1748, 120
      %v1750 = vpop.permute.xlu0 %1749
      %v1752 = vsel %vm1725, %v1750, 0
      %1754 = vmatpush.bf16.msra.mxu0 0
      %1755 = vmatpush.bf16.msra.mxu0 0
      %1756 = vmatpush.bf16.msra.mxu0 0
      %1757 = vmatpush.bf16.msra.mxu0 0
      %1758 = vmatpush.bf16.msra.mxu0 0
      %1759 = vmatpush.bf16.msra.mxu0 0
      %1760 = vmatpush.bf16.msra.mxu0 0
      %1761 = vmatpush.bf16.msra.mxu0 %v1731
      %1762 = vmatmul.bf16.gmra.mxu0 %v1752
      %v1763 = vpop.f32.mrf.mxu0
      %v1764 = vadd.f32 0.0, %v1763
      %v1765 = vpop.f32.mrf.mxu0
      %1766 = vdwg.mxu0
      %1767 = vrot.lane.b32.xlu0 %v1748, 112
      %v1768 = vpop.permute.xlu0 %1767
      %v1770 = vsel %vm1725, %v1768, 0
      %1772 = vmatpush.bf16.msra.mxu0 0
      %1773 = vmatpush.bf16.msra.mxu0 0
      %1774 = vmatpush.bf16.msra.mxu0 0
      %1775 = vmatpush.bf16.msra.mxu0 0
      %1776 = vmatpush.bf16.msra.mxu0 0
      %1777 = vmatpush.bf16.msra.mxu0 0
      %1778 = vmatpush.bf16.msra.mxu0 0
      %1779 = vmatpush.bf16.msra.mxu0 %v1731
      %1780 = vmatmul.bf16.gmra.mxu0 %v1770
      %v1781 = vpop.f32.mrf.mxu0
      %v1782 = vadd.f32 0.0, %v1781
      %v1783 = vpop.f32.mrf.mxu0
      %1784 = vdwg.mxu0
      %1785 = vrot.lane.b32.xlu0 %v1748, 104
      %v1786 = vpop.permute.xlu0 %1785
      %v1788 = vsel %vm1725, %v1786, 0
      %1790 = vmatpush.bf16.msra.mxu0 0
      %1791 = vmatpush.bf16.msra.mxu0 0
      %1792 = vmatpush.bf16.msra.mxu0 0
      %1793 = vmatpush.bf16.msra.mxu0 0
      %1794 = vmatpush.bf16.msra.mxu0 0
      %1795 = vmatpush.bf16.msra.mxu0 0
      %1796 = vmatpush.bf16.msra.mxu0 0
      %1797 = vmatpush.bf16.msra.mxu0 %v1731
      %1798 = vmatmul.bf16.gmra.mxu0 %v1788
      %v1799 = vpop.f32.mrf.mxu0
      %v1800 = vadd.f32 0.0, %v1799
      %v1801 = vpop.f32.mrf.mxu0
      %1802 = vdwg.mxu0
      %1804 = vrot.lane.b32.xlu0 %v1764, 32
      %v1805 = vpop.permute.xlu0 %1804
      %1808 = vrot.lane.b32.xlu0 %v1782, 64
      %v1809 = vpop.permute.xlu0 %1808
      %1812 = vrot.lane.b32.xlu0 %v1800, 96
      %v1813 = vpop.permute.xlu0 %1812
      %vm1815 = vcmask 261120
      %v1816 = vsel %vm1815, %v1743, %v1805
      %vm1817 = vcmask 523264
      %v1818 = vsel %vm1817, %v1816, %v1809
      %vm1819 = vcmask 785408
      %v1820 = vsel %vm1819, %v1818, %v1813
      %v1821 = vld [vmem:[%s10] sm:$0x1]
      %v1823 = vperm.slane %v1821, 0
      %v1825 = vadd.f32 %v1820, %v1823
      %v1826 = vadd.f32 %v1825, %v1465
      %v1827 = vmax.f32 %v1826, 0.0
      %v1828 = vpack.c.bf16 %v1827, %v1827
      %v1830 = vunpack.c.l.b16 %v1828
      %v1831 = vpack.c.b16 %v1830, %v1830
      %v1833 = vshrl.u32 %v1831, 16
      %v1835 = vrot.slane %v1833, 7
      %v1836 = vshll.u32 %v1831, 16
      %v1838 = vor.u32 %v1835, %v1836
      %v1840 = vsel %vm879, 0, %v1838
      %v1841 = vrot.slane %v1836, 1
      %v1842 = vor.u32 %v1833, %v1841
      %v1844 = vsel %vm886, %v1842, 0
      %v1845 = vld [vmem:[%s11] sm:$0xf]
      %v1846 = vld [vmem:[%s11 + $0x4] sm:$0xf]
      %v1847 = vld [vmem:[%s11 + $0x8] sm:$0xf]
      %v1848 = vld [vmem:[%s11 + $0xc] sm:$0xf]
      %v1849 = vld [vmem:[%s11 + $0x10] sm:$0xf]
      %v1850 = vld [vmem:[%s11 + $0x14] sm:$0xf]
      %v1851 = vld [vmem:[%s11 + $0x18] sm:$0xf]
      %v1852 = vld [vmem:[%s11 + $0x1c] sm:$0xf]
      %v1853 = vld [vmem:[%s11 + $0x20] sm:$0xf]
      %v1854 = vld [vmem:[%s11 + $0x24] sm:$0xf]
      %v1855 = vld [vmem:[%s11 + $0x28] sm:$0xf]
      %v1856 = vld [vmem:[%s11 + $0x2c] sm:$0xf]
      %v1857 = vld [vmem:[%s11 + $0x30] sm:$0xf]
      %v1858 = vld [vmem:[%s11 + $0x34] sm:$0xf]
      %v1859 = vld [vmem:[%s11 + $0x38] sm:$0xf]
      %v1860 = vld [vmem:[%s11 + $0x3c] sm:$0xf]
      %s1861 = scalar_lea.vmem %s11, 64
      %v1862 = vld [vmem:[%s1861] sm:$0xf]
      %v1863 = vld [vmem:[%s1861 + $0x4] sm:$0xf]
      %v1864 = vld [vmem:[%s1861 + $0x8] sm:$0xf]
      %v1865 = vld [vmem:[%s1861 + $0xc] sm:$0xf]
      %v1866 = vld [vmem:[%s1861 + $0x10] sm:$0xf]
      %v1867 = vld [vmem:[%s1861 + $0x14] sm:$0xf]
      %v1868 = vld [vmem:[%s1861 + $0x18] sm:$0xf]
      %v1869 = vld [vmem:[%s1861 + $0x1c] sm:$0xf]
      %v1870 = vld [vmem:[%s1861 + $0x20] sm:$0xf]
      %v1871 = vld [vmem:[%s1861 + $0x24] sm:$0xf]
      %v1872 = vld [vmem:[%s1861 + $0x28] sm:$0xf]
      %v1873 = vld [vmem:[%s1861 + $0x2c] sm:$0xf]
      %v1874 = vld [vmem:[%s1861 + $0x30] sm:$0xf]
      %v1875 = vld [vmem:[%s1861 + $0x34] sm:$0xf]
      %v1876 = vld [vmem:[%s1861 + $0x38] sm:$0xf]
      %v1877 = vld [vmem:[%s1861 + $0x3c] sm:$0xf]
      %v1894 = vunpack.c.l.b16 %v1862
      %v1895 = vunpack.c.l.b16 %v1863
      %v1896 = vunpack.c.l.b16 %v1864
      %v1897 = vunpack.c.l.b16 %v1865
      %v1898 = vunpack.c.l.b16 %v1866
      %v1899 = vunpack.c.l.b16 %v1867
      %v1900 = vunpack.c.l.b16 %v1868
      %v1901 = vunpack.c.l.b16 %v1869
      %v1902 = vunpack.c.l.b16 %v1870
      %v1903 = vunpack.c.l.b16 %v1871
      %v1904 = vunpack.c.l.b16 %v1872
      %v1905 = vunpack.c.l.b16 %v1873
      %v1906 = vunpack.c.l.b16 %v1874
      %v1907 = vunpack.c.l.b16 %v1875
      %v1908 = vunpack.c.l.b16 %v1876
      %v1909 = vunpack.c.l.b16 %v1877
      %v1910 = vpack.c.b16 %v1895, %v1894
      %v1911 = vpack.c.b16 %v1897, %v1896
      %v1912 = vpack.c.b16 %v1899, %v1898
      %v1913 = vpack.c.b16 %v1901, %v1900
      %v1914 = vpack.c.b16 %v1903, %v1902
      %v1915 = vpack.c.b16 %v1905, %v1904
      %v1916 = vpack.c.b16 %v1907, %v1906
      %v1917 = vpack.c.b16 %v1909, %v1908
      %1926 = vmatpush.bf16.msra.mxu0 %v1917
      %1927 = vmatpush.bf16.msra.mxu0 %v1916
      %1928 = vmatpush.bf16.msra.mxu0 %v1915
      %1929 = vmatpush.bf16.msra.mxu0 %v1914
      %1930 = vmatpush.bf16.msra.mxu0 %v1913
      %1931 = vmatpush.bf16.msra.mxu0 %v1912
      %1932 = vmatpush.bf16.msra.mxu0 %v1911
      %1933 = vmatpush.bf16.msra.mxu0 %v1910
      %1934 = vmatmul.bf16.gmra.mxu0 %v1828
      %v1935 = vpop.f32.mrf.mxu0
      %v1936 = vadd.f32 0.0, %v1935
      %v1937 = vpop.f32.mrf.mxu0
      %1938 = vdwg.mxu0
      %v1955 = vunpack.c.l.b16 %v1845
      %v1956 = vunpack.c.l.b16 %v1846
      %v1957 = vunpack.c.l.b16 %v1847
      %v1958 = vunpack.c.l.b16 %v1848
      %v1959 = vunpack.c.l.b16 %v1849
      %v1960 = vunpack.c.l.b16 %v1850
      %v1961 = vunpack.c.l.b16 %v1851
      %v1962 = vunpack.c.l.b16 %v1852
      %v1963 = vunpack.c.l.b16 %v1853
      %v1964 = vunpack.c.l.b16 %v1854
      %v1965 = vunpack.c.l.b16 %v1855
      %v1966 = vunpack.c.l.b16 %v1856
      %v1967 = vunpack.c.l.b16 %v1857
      %v1968 = vunpack.c.l.b16 %v1858
      %v1969 = vunpack.c.l.b16 %v1859
      %v1970 = vunpack.c.l.b16 %v1860
      %v1971 = vpack.c.b16 %v1956, %v1955
      %v1972 = vpack.c.b16 %v1958, %v1957
      %v1973 = vpack.c.b16 %v1960, %v1959
      %v1974 = vpack.c.b16 %v1962, %v1961
      %v1975 = vpack.c.b16 %v1964, %v1963
      %v1976 = vpack.c.b16 %v1966, %v1965
      %v1977 = vpack.c.b16 %v1968, %v1967
      %v1978 = vpack.c.b16 %v1970, %v1969
      %1987 = vmatpush.bf16.msra.mxu0 %v1978
      %1988 = vmatpush.bf16.msra.mxu0 %v1977
      %1989 = vmatpush.bf16.msra.mxu0 %v1976
      %1990 = vmatpush.bf16.msra.mxu0 %v1975
      %1991 = vmatpush.bf16.msra.mxu0 %v1974
      %1992 = vmatpush.bf16.msra.mxu0 %v1973
      %1993 = vmatpush.bf16.msra.mxu0 %v1972
      %1994 = vmatpush.bf16.msra.mxu0 %v1971
      %1995 = vmatmul.bf16.gmra.mxu0 %v1840
      %v1996 = vpop.f32.mrf.mxu0
      %v1997 = vadd.f32 %v1936, %v1996
      %v1998 = vpop.f32.mrf.mxu0
      %1999 = vdwg.mxu0
      %s2000 = scalar_lea.vmem %s11, 128
      %v2001 = vld [vmem:[%s2000] sm:$0xf]
      %v2002 = vld [vmem:[%s2000 + $0x4] sm:$0xf]
      %v2003 = vld [vmem:[%s2000 + $0x8] sm:$0xf]
      %v2004 = vld [vmem:[%s2000 + $0xc] sm:$0xf]
      %v2005 = vld [vmem:[%s2000 + $0x10] sm:$0xf]
      %v2006 = vld [vmem:[%s2000 + $0x14] sm:$0xf]
      %v2007 = vld [vmem:[%s2000 + $0x18] sm:$0xf]
      %v2008 = vld [vmem:[%s2000 + $0x1c] sm:$0xf]
      %v2009 = vld [vmem:[%s2000 + $0x20] sm:$0xf]
      %v2010 = vld [vmem:[%s2000 + $0x24] sm:$0xf]
      %v2011 = vld [vmem:[%s2000 + $0x28] sm:$0xf]
      %v2012 = vld [vmem:[%s2000 + $0x2c] sm:$0xf]
      %v2013 = vld [vmem:[%s2000 + $0x30] sm:$0xf]
      %v2014 = vld [vmem:[%s2000 + $0x34] sm:$0xf]
      %v2015 = vld [vmem:[%s2000 + $0x38] sm:$0xf]
      %v2016 = vld [vmem:[%s2000 + $0x3c] sm:$0xf]
      %v2033 = vunpack.c.l.b16 %v2001
      %v2034 = vunpack.c.l.b16 %v2002
      %v2035 = vunpack.c.l.b16 %v2003
      %v2036 = vunpack.c.l.b16 %v2004
      %v2037 = vunpack.c.l.b16 %v2005
      %v2038 = vunpack.c.l.b16 %v2006
      %v2039 = vunpack.c.l.b16 %v2007
      %v2040 = vunpack.c.l.b16 %v2008
      %v2041 = vunpack.c.l.b16 %v2009
      %v2042 = vunpack.c.l.b16 %v2010
      %v2043 = vunpack.c.l.b16 %v2011
      %v2044 = vunpack.c.l.b16 %v2012
      %v2045 = vunpack.c.l.b16 %v2013
      %v2046 = vunpack.c.l.b16 %v2014
      %v2047 = vunpack.c.l.b16 %v2015
      %v2048 = vunpack.c.l.b16 %v2016
      %v2049 = vpack.c.b16 %v2034, %v2033
      %v2050 = vpack.c.b16 %v2036, %v2035
      %v2051 = vpack.c.b16 %v2038, %v2037
      %v2052 = vpack.c.b16 %v2040, %v2039
      %v2053 = vpack.c.b16 %v2042, %v2041
      %v2054 = vpack.c.b16 %v2044, %v2043
      %v2055 = vpack.c.b16 %v2046, %v2045
      %v2056 = vpack.c.b16 %v2048, %v2047
      %2065 = vmatpush.bf16.msra.mxu0 %v2056
      %2066 = vmatpush.bf16.msra.mxu0 %v2055
      %2067 = vmatpush.bf16.msra.mxu0 %v2054
      %2068 = vmatpush.bf16.msra.mxu0 %v2053
      %2069 = vmatpush.bf16.msra.mxu0 %v2052
      %2070 = vmatpush.bf16.msra.mxu0 %v2051
      %2071 = vmatpush.bf16.msra.mxu0 %v2050
      %2072 = vmatpush.bf16.msra.mxu0 %v2049
      %2073 = vmatmul.bf16.gmra.mxu0 %v1844
      %v2074 = vpop.f32.mrf.mxu0
      %v2075 = vadd.f32 0.0, %v2074
      %v2076 = vpop.f32.mrf.mxu0
      %2077 = vdwg.mxu0
      %v2078 = vadd.f32 %v1997, %v2075
      %v2079 = vld [vmem:[%s12] sm:$0x1]
      %v2081 = vperm.slane %v2079, 0
      %v2083 = vadd.f32 %v2078, %v2081
      %v2084 = vmax.f32 %v2083, 0.0
      %v2085 = vpack.c.bf16 %v2084, %v2084
      %v2086 = vld [vmem:[%s13] sm:$0xf]
      %v2088 = vsel %vm1725, %v2085, 0
      %v2091 = vsel %vm1729, %v2086, 0
      %2093 = vmatpush.bf16.msra.mxu0 0
      %2094 = vmatpush.bf16.msra.mxu0 0
      %2095 = vmatpush.bf16.msra.mxu0 0
      %2096 = vmatpush.bf16.msra.mxu0 0
      %2097 = vmatpush.bf16.msra.mxu0 0
      %2098 = vmatpush.bf16.msra.mxu0 0
      %2099 = vmatpush.bf16.msra.mxu0 0
      %2100 = vmatpush.bf16.msra.mxu0 %v2091
      %2101 = vmatmul.bf16.gmra.mxu0 %v2088
      %v2102 = vpop.f32.mrf.mxu0
      %v2103 = vadd.f32 0.0, %v2102
      %v2104 = vpop.f32.mrf.mxu0
      %2105 = vdwg.mxu0
      %v2107 = vunpack.c.l.b16 %v2085
      %v2108 = vpack.c.b16 %v2107, %v2107
      %2109 = vrot.lane.b32.xlu0 %v2108, 120
      %v2110 = vpop.permute.xlu0 %2109
      %v2112 = vsel %vm1725, %v2110, 0
      %2114 = vmatpush.bf16.msra.mxu0 0
      %2115 = vmatpush.bf16.msra.mxu0 0
      %2116 = vmatpush.bf16.msra.mxu0 0
      %2117 = vmatpush.bf16.msra.mxu0 0
      %2118 = vmatpush.bf16.msra.mxu0 0
      %2119 = vmatpush.bf16.msra.mxu0 0
      %2120 = vmatpush.bf16.msra.mxu0 0
      %2121 = vmatpush.bf16.msra.mxu0 %v2091
      %2122 = vmatmul.bf16.gmra.mxu0 %v2112
      %v2123 = vpop.f32.mrf.mxu0
      %v2124 = vadd.f32 0.0, %v2123
      %v2125 = vpop.f32.mrf.mxu0
      %2126 = vdwg.mxu0
      %2127 = vrot.lane.b32.xlu0 %v2108, 112
      %v2128 = vpop.permute.xlu0 %2127
      %v2130 = vsel %vm1725, %v2128, 0
      %2132 = vmatpush.bf16.msra.mxu0 0
      %2133 = vmatpush.bf16.msra.mxu0 0
      %2134 = vmatpush.bf16.msra.mxu0 0
      %2135 = vmatpush.bf16.msra.mxu0 0
      %2136 = vmatpush.bf16.msra.mxu0 0
      %2137 = vmatpush.bf16.msra.mxu0 0
      %2138 = vmatpush.bf16.msra.mxu0 0
      %2139 = vmatpush.bf16.msra.mxu0 %v2091
      %2140 = vmatmul.bf16.gmra.mxu0 %v2130
      %v2141 = vpop.f32.mrf.mxu0
      %v2142 = vadd.f32 0.0, %v2141
      %v2143 = vpop.f32.mrf.mxu0
      %2144 = vdwg.mxu0
      %2145 = vrot.lane.b32.xlu0 %v2108, 104
      %v2146 = vpop.permute.xlu0 %2145
      %v2148 = vsel %vm1725, %v2146, 0
      %2150 = vmatpush.bf16.msra.mxu0 0
      %2151 = vmatpush.bf16.msra.mxu0 0
      %2152 = vmatpush.bf16.msra.mxu0 0
      %2153 = vmatpush.bf16.msra.mxu0 0
      %2154 = vmatpush.bf16.msra.mxu0 0
      %2155 = vmatpush.bf16.msra.mxu0 0
      %2156 = vmatpush.bf16.msra.mxu0 0
      %2157 = vmatpush.bf16.msra.mxu0 %v2091
      %2158 = vmatmul.bf16.gmra.mxu0 %v2148
      %v2159 = vpop.f32.mrf.mxu0
      %v2160 = vadd.f32 0.0, %v2159
      %v2161 = vpop.f32.mrf.mxu0
      %2162 = vdwg.mxu0
      %2164 = vrot.lane.b32.xlu0 %v2124, 32
      %v2165 = vpop.permute.xlu0 %2164
      %2168 = vrot.lane.b32.xlu0 %v2142, 64
      %v2169 = vpop.permute.xlu0 %2168
      %2172 = vrot.lane.b32.xlu0 %v2160, 96
      %v2173 = vpop.permute.xlu0 %2172
      %v2175 = vsel %vm1815, %v2103, %v2165
      %v2176 = vsel %vm1817, %v2175, %v2169
      %v2177 = vsel %vm1819, %v2176, %v2173
      %v2178 = vld [vmem:[%s14] sm:$0x1]
      %v2180 = vperm.slane %v2178, 0
      %v2182 = vadd.f32 %v2177, %v2180
      %v2183 = vadd.f32 %v2182, %v1827
      %v2184 = vmax.f32 %v2183, 0.0
      %2185 = vst [vmem:[%s492] sm:$0xf] %v2184
      %p2186 = scmp.lt.s32.totalorder %s26, 1
      %s2187 = scalar_select %p2186, %s26, 1
      %s2188 = smul.addr %s2187, 4
      %s2189 = scalar_lea.vmem %s15, %s2188
      // Predicated region
      $region81: #{deepmind_encoder_forward.1} parent=79 // pred_check
        %p2190 = pneg %p364
      $region82: #{deepmind_encoder_forward.1} parent=79 // pred_check_branch
        %2192 = sbr.rel (%p2190) target = $region84
      $region83: #{deepmind_encoder_forward.1} parent=79 // pred_region
        _
      $region84: #{deepmind_encoder_forward.1} parent=79 // pred_fallthru
        _
    $region80: #{deepmind_encoder_forward.1} parent=5 // pred_fallthru
      _
    %p2193 = scmp.le.s32.totalorder 2, %s21
    // Predicated region
    $region85: #{deepmind_encoder_forward.1} parent=5 // pred_check
      %p2194 = pneg %p2193
    $region86: #{deepmind_encoder_forward.1} parent=5 // pred_check_branch
      %2196 = sbr.rel (%p2194) target = $region88
    $region87: #{deepmind_encoder_forward.1} parent=5 // pred_region
      %s2197 = ssub.s32 %s21, 2
      // Predicated region
      $region89: #{deepmind_encoder_forward.1} parent=87 // pred_check
        %p2198 = pneg %p370
      $region90: #{deepmind_encoder_forward.1} parent=87 // pred_check_branch
        %2200 = sbr.rel (%p2198) target = $region92
      $region91: #{deepmind_encoder_forward.1} parent=87 // pred_region
        %p2201 = scmp.lt.s32.totalorder %s27, 1
        %s2202 = scalar_select %p2201, %s27, 1
        %s2203 = smul.addr %s2202, 4
        %s2204 = scalar_lea.vmem %s15, %s2203
      $region92: #{deepmind_encoder_forward.1} parent=87 // pred_fallthru
        _
    $region88: #{deepmind_encoder_forward.1} parent=5 // pred_fallthru
      _
  $region6: #{deepmind_encoder_forward.1} parent=0 // loop_footer
    %s25 = sadd.s32 1, %s21
  $region7: #{deepmind_encoder_forward.1} parent=0 // loop_footer_branch
    %20 = sbr.rel target = $region3
  $region8: #{deepmind_encoder_forward.1} parent=0 // loop_exit
    _

</llo_original>
